<compile_context>
chip_gen: v7x
topology: tpu7x:2x2x1
jax: 0.10.0
libtpu: 0.0.40
codegen_flags: <defaults>
</compile_context>

<pallas_src>
import jax
import jax.numpy as jnp
import numpy as np
from jax.experimental import pallas as pl
from jax.experimental.pallas import tpu as pltpu


# ---------------------------------------------------------------------------
# Kernel: per-(image, output-row-parity) ConvTranspose2d(4,2,1) + ReLU
#         + per-channel partial BN statistics.
# ---------------------------------------------------------------------------
def _deconv_relu_stats_kernel(x_ref, w_ref, y_ref, stats_ref):
    """
    Grid: (N, 2); axis 1 = output-row parity `py` (both axes "parallel").

    x_ref:     (1, H+2, W+2, Cin)  bf16  zero-padded NHWC input (block constant
                                         across the parity axis -> DMA reused)
    w_ref:     (2, 2, 4*Cin, Cp)   bf16  merged per-(py, px) weight matrices
    y_ref:     (1, H, 1, W, 2*Cp)  bf16  this parity's slice of the
                                         phase-interleaved activation
    stats_ref: (1, 1, 2, Cp)       f32   partial [sum; sumsq] over 2*H*W rows
    """
    H = y_ref.shape[1]
    W = y_ref.shape[3]
    Cp = stats_ref.shape[3]
    Cin = x_ref.shape[3]
    py = pl.program_id(1)

    # Distinct shifted views for this row parity (row shift in {py, py+1},
    # column shift in {0, 1, 2}): materialized once, reused by both phases.
    views = {}
    for d in range(2):
        for c in range(3):
            views[(d, c)] = x_ref[0, pl.ds(py + d, H), c:c + W, :].reshape(
                H * W, Cin)

    ch_sum = jnp.zeros((1, Cp), jnp.float32)
    ch_sq = jnp.zeros((1, Cp), jnp.float32)

    for px in range(2):                       # output-column parity
        # Merge the 4 taps of this phase along K: one MXU matmul, K = 4*Cin,
        # f32 accumulation stays inside the MXU.
        xcat = jnp.concatenate(
            [views[(0, px)], views[(0, px + 1)],
             views[(1, px)], views[(1, px + 1)]], axis=1)        # (H*W, 4*Cin)
        acc = jnp.dot(xcat, w_ref[py, px],
                      preferred_element_type=jnp.float32)        # (H*W, Cp)
        yph = jnp.maximum(acc, 0.0)                              # ReLU
        # BN statistics from the f32 result (before the bf16 store cast).
        ch_sum = ch_sum + jnp.sum(yph, axis=0, keepdims=True)
        ch_sq = ch_sq + jnp.sum(yph * yph, axis=0, keepdims=True)
        # Lane-aligned store into the interleaved layout (px*Cp % 128 == 0;
        # W % 8 == 0 keeps the reshape a free view).
        y_ref[0, :, 0, :, px * Cp:(px + 1) * Cp] = (
            yph.reshape(H, W, Cp).astype(y_ref.dtype))

    stats_ref[0, 0, 0:1, :] = ch_sum
    stats_ref[0, 0, 1:2, :] = ch_sq


# ---------------------------------------------------------------------------
# Host-side wrapper
# ---------------------------------------------------------------------------
def _round_up(v, m):
    return (v + m - 1) // m * m


def _vmem_limit_bytes(H, W, Cin, Cp):
    """Rough per-grid-step VMEM footprint; clamp to a sane explicit limit."""
    bf16 = 2
    x_blk = (H + 2) * (W + 2) * Cin * bf16
    w_blk = 2 * 2 * 4 * Cin * Cp * bf16                # single-buffered
    y_blk = H * W * 2 * Cp * bf16
    st_blk = 2 * Cp * 4
    tmp = H * W * (6 * Cin + 2 * 4 * Cin) * bf16 + 2 * H * W * Cp * 4
    est = 2 * (x_blk + y_blk + st_blk) + w_blk + tmp
    return int(min(max(2 * est, 32 * 2**20), 100 * 2**20))


def deconv_block_forward(x, weight, gamma, beta, eps=1e-5):
    """x: (N,Cin,H,W) f32, weight: (Cin,Cout,4,4) f32 -> (N,Cout,2H,2W) f32."""
    N, Cin, H, W = x.shape
    Cout = weight.shape[1]
    Cp = _round_up(Cout, 128)            # lane-dense padded channel count

    # Zero-padded NHWC input (1-pixel halo), bf16 for the MXU.
    xp = jnp.pad(jnp.transpose(x, (0, 2, 3, 1)),
                 ((0, 0), (1, 1), (1, 1), (0, 0))).astype(jnp.bfloat16)

    # Merged per-(py, px) weights, K = 4*Cin (tap order (d,e) = 00,01,10,11):
    # out[n, 2i+py, 2j+px, :] =
    #   sum_{d,e} xp[n, i+py+d, j+px+e, :] @ weight[:, :, 3-py-2d, 3-px-2e]
    rows = []
    for py in range(2):
        cols = []
        for px in range(2):
            blocks = [weight[:, :, 3 - py - 2 * d, 3 - px - 2 * e]
                      for d in range(2) for e in range(2)]
            cols.append(jnp.concatenate(blocks, axis=0))          # (4*Cin, Cout)
        rows.append(jnp.stack(cols, axis=0))
    w_merged = jnp.stack(rows, axis=0)                            # (2,2,4Cin,Cout)
    w_merged = jnp.pad(w_merged, ((0, 0), (0, 0), (0, 0), (0, Cp - Cout))
                       ).astype(jnp.bfloat16)

    # --- Pallas: deconv + ReLU -> bf16 interleaved activation + f32 stats ----
    y, stats = pl.pallas_call(
        _deconv_relu_stats_kernel,
        out_shape=(jax.ShapeDtypeStruct((N, H, 2, W, 2 * Cp), jnp.bfloat16),
                   jax.ShapeDtypeStruct((N, 2, 2, Cp), jnp.float32)),
        grid_spec=pltpu.PrefetchScalarGridSpec(
            num_scalar_prefetch=0,
            grid=(N, 2),
            in_specs=[
                pl.BlockSpec((1, H + 2, W + 2, Cin),
                             lambda n, p: (n, 0, 0, 0)),
                pl.BlockSpec((2, 2, 4 * Cin, Cp),
                             lambda n, p: (0, 0, 0, 0),
                             pipeline_mode=pl.Buffered(1)),   # one VMEM copy
            ],
            out_specs=[
                pl.BlockSpec((1, H, 1, W, 2 * Cp),
                             lambda n, p: (n, 0, p, 0, 0)),
                pl.BlockSpec((1, 1, 2, Cp),
                             lambda n, p: (n, p, 0, 0)),
            ]),
        compiler_params=pltpu.CompilerParams(
            dimension_semantics=("parallel", "parallel"),
            vmem_limit_bytes=_vmem_limit_bytes(H, W, Cin, Cp)),
    )(xp, w_merged)

    # BatchNorm (training-mode) statistics from the partial sums.
    count = jnp.float32(N * 4 * H * W)                 # = N * (2H) * (2W)
    tot = jnp.sum(stats, axis=(0, 1))                  # (2, Cp) f32
    mean = tot[0] / count
    var = jnp.maximum(tot[1] / count - mean * mean, 0.0)   # clamp (cancellation)
    inv_std = jax.lax.rsqrt(var + eps)
    gamma_p = jnp.pad(gamma.astype(jnp.float32), (0, Cp - Cout),
                      constant_values=1.0)
    beta_p = jnp.pad(beta.astype(jnp.float32), (0, Cp - Cout))
    scale = gamma_p * inv_std
    shift = beta_p - mean * scale

    # Fused XLA epilogue: BN affine + f32 cast + de-interleave (free reshape of
    # the (N,H,2,W,2*Cp) layout) + channel slice + NHWC->NCHW transpose in a
    # single activation read/write (no second Pallas HBM pass).
    y_bn = y.astype(jnp.float32) * jnp.tile(scale, 2) + jnp.tile(shift, 2)
    y_nhwc = y_bn.reshape(N, 2 * H, 2 * W, Cp)[:, :, :, :Cout]
    return jnp.transpose(y_nhwc, (0, 3, 1, 2))          # NCHW, f32


# ---------------------------------------------------------------------------
# Pure-JAX reference (bf16-rounded operands, f32 accumulation) for self-check
# ---------------------------------------------------------------------------
def reference_forward(x, weight, gamma, beta, eps=1e-5):
    xb = x.astype(jnp.bfloat16).astype(jnp.float32)
    wb = weight.astype(jnp.bfloat16).astype(jnp.float32)
    # ConvTranspose2d(k=4,s=2,p=1) == stride-1 conv of lhs-dilated(2) input
    # with spatially flipped kernel and padding k-1-p = 2.
    w_conv = jnp.transpose(wb[:, :, ::-1, ::-1], (1, 0, 2, 3))     # OIHW
    y = jax.lax.conv_general_dilated(
        xb, w_conv, window_strides=(1, 1), padding=((2, 2), (2, 2)),
        lhs_dilation=(2, 2), dimension_numbers=('NCHW', 'OIHW', 'NCHW'),
        precision=jax.lax.Precision.HIGHEST)
    y = jnp.maximum(y, 0.0)
    mean = y.mean(axis=(0, 2, 3), keepdims=True)
    var = y.var(axis=(0, 2, 3), keepdims=True)                     # biased
    y = (y - mean) * jax.lax.rsqrt(var + eps)
    return y * gamma[None, :, None, None] + beta[None, :, None, None]


if __name__ == "__main__":
    key = jax.random.PRNGKey(0)
    kx, kw = jax.random.split(key)

    # Small shapes consistent with the module's forward (NCHW).
    N, Cin, Cout, H, W = 2, 4, 8, 16, 16
    x = jax.random.normal(kx, (N, Cin, H, W), dtype=jnp.float32)
    weight = jax.random.normal(kw, (Cin, Cout, 4, 4), dtype=jnp.float32) * 0.1
    gamma = jnp.ones((Cout,), jnp.float32)    # BatchNorm2d default affine init
    beta = jnp.zeros((Cout,), jnp.float32)

    fwd = jax.jit(deconv_block_forward)
    out = jax.block_until_ready(fwd(x, weight, gamma, beta))
    assert out.shape == (N, Cout, 2 * H, 2 * W)

    ref = reference_forward(x, weight, gamma, beta)
    # Tolerance sized for bf16 storage of the pre-BN activation.
    np.testing.assert_allclose(np.asarray(out), np.asarray(ref),
                               atol=5e-2, rtol=5e-2)
    print("KERNEL_OK")
</pallas_src>

<mosaic_0001>
module attributes {stable_mosaic.version = 11 : i64} {
  func.func @_deconv_relu_stats_kernel(%arg0: i32, %arg1: i32, %arg2: memref<1x18x18x4xbf16, #tpu.memory_space<vmem>>, %arg3: memref<2x2x16x128xbf16, #tpu.memory_space<vmem>>, %arg4: memref<1x16x1x16x256xbf16, #tpu.memory_space<vmem>>, %arg5: memref<1x1x2x128xf32, #tpu.memory_space<vmem>>) attributes {dimension_semantics = [#tpu.dimension_semantics<parallel>, #tpu.dimension_semantics<parallel>], iteration_bounds = array<i64: 2, 2>, scalar_prefetch = 0 : i64, scratch_operands = 0 : i64, tpu.core_type = #tpu.core_type<tc>, window_params = [{transform_indices = @transform_0, window_bounds = array<i64: 1, 18, 18, 4>}, {pipeline_mode = #tpu.pipeline_mode<synchronous>, transform_indices = @transform_1, window_bounds = array<i64: 2, 2, 16, 128>}, {transform_indices = @transform_2, window_bounds = array<i64: 1, 16, 1, 16, 256>}, {transform_indices = @transform_3, window_bounds = array<i64: 1, 1, 2, 128>}]} {
    %c0_i32 = arith.constant 0 : i32
    %0 = arith.addi %arg1, %c0_i32 : i32
    %c0 = arith.constant 0 : index
    %1 = arith.index_cast %0 : i32 to index
    %c0_0 = arith.constant 0 : index
    %c0_1 = arith.constant 0 : index
    %2 = vector.load %arg2[%c0, %1, %c0_0, %c0_1] : memref<1x18x18x4xbf16, #tpu.memory_space<vmem>>, vector<1x16x16x4xbf16>
    %3 = vector.shape_cast %2 : vector<1x16x16x4xbf16> to vector<16x16x4xbf16>
    %4 = vector.shape_cast %3 : vector<16x16x4xbf16> to vector<256x4xbf16>
    %c0_i32_2 = arith.constant 0 : i32
    %5 = arith.addi %arg1, %c0_i32_2 : i32
    %c0_3 = arith.constant 0 : index
    %6 = arith.index_cast %5 : i32 to index
    %c1 = arith.constant 1 : index
    %c0_4 = arith.constant 0 : index
    %7 = vector.load %arg2[%c0_3, %6, %c1, %c0_4] : memref<1x18x18x4xbf16, #tpu.memory_space<vmem>>, vector<1x16x16x4xbf16>
    %8 = vector.shape_cast %7 : vector<1x16x16x4xbf16> to vector<16x16x4xbf16>
    %9 = vector.shape_cast %8 : vector<16x16x4xbf16> to vector<256x4xbf16>
    %c0_i32_5 = arith.constant 0 : i32
    %10 = arith.addi %arg1, %c0_i32_5 : i32
    %c0_6 = arith.constant 0 : index
    %11 = arith.index_cast %10 : i32 to index
    %c2 = arith.constant 2 : index
    %c0_7 = arith.constant 0 : index
    %12 = vector.load %arg2[%c0_6, %11, %c2, %c0_7] : memref<1x18x18x4xbf16, #tpu.memory_space<vmem>>, vector<1x16x16x4xbf16>
    %13 = vector.shape_cast %12 : vector<1x16x16x4xbf16> to vector<16x16x4xbf16>
    %14 = vector.shape_cast %13 : vector<16x16x4xbf16> to vector<256x4xbf16>
    %c1_i32 = arith.constant 1 : i32
    %15 = arith.addi %arg1, %c1_i32 : i32
    %c0_8 = arith.constant 0 : index
    %16 = arith.index_cast %15 : i32 to index
    %c0_9 = arith.constant 0 : index
    %c0_10 = arith.constant 0 : index
    %17 = vector.load %arg2[%c0_8, %16, %c0_9, %c0_10] : memref<1x18x18x4xbf16, #tpu.memory_space<vmem>>, vector<1x16x16x4xbf16>
    %18 = vector.shape_cast %17 : vector<1x16x16x4xbf16> to vector<16x16x4xbf16>
    %19 = vector.shape_cast %18 : vector<16x16x4xbf16> to vector<256x4xbf16>
    %c1_i32_11 = arith.constant 1 : i32
    %20 = arith.addi %arg1, %c1_i32_11 : i32
    %c0_12 = arith.constant 0 : index
    %21 = arith.index_cast %20 : i32 to index
    %c1_13 = arith.constant 1 : index
    %c0_14 = arith.constant 0 : index
    %22 = vector.load %arg2[%c0_12, %21, %c1_13, %c0_14] : memref<1x18x18x4xbf16, #tpu.memory_space<vmem>>, vector<1x16x16x4xbf16>
    %23 = vector.shape_cast %22 : vector<1x16x16x4xbf16> to vector<16x16x4xbf16>
    %24 = vector.shape_cast %23 : vector<16x16x4xbf16> to vector<256x4xbf16>
    %c1_i32_15 = arith.constant 1 : i32
    %25 = arith.addi %arg1, %c1_i32_15 : i32
    %c0_16 = arith.constant 0 : index
    %26 = arith.index_cast %25 : i32 to index
    %c2_17 = arith.constant 2 : index
    %c0_18 = arith.constant 0 : index
    %27 = vector.load %arg2[%c0_16, %26, %c2_17, %c0_18] : memref<1x18x18x4xbf16, #tpu.memory_space<vmem>>, vector<1x16x16x4xbf16>
    %28 = vector.shape_cast %27 : vector<1x16x16x4xbf16> to vector<16x16x4xbf16>
    %29 = vector.shape_cast %28 : vector<16x16x4xbf16> to vector<256x4xbf16>
    %cst = arith.constant 0.000000e+00 : f32
    %30 = vector.broadcast %cst : f32 to vector<1x128xf32>
    %cst_19 = arith.constant 0.000000e+00 : f32
    %31 = vector.broadcast %cst_19 : f32 to vector<1x128xf32>
    %32 = tpu.concatenate %4, %9, %19, %24 in 1 : vector<256x4xbf16>, vector<256x4xbf16>, vector<256x4xbf16>, vector<256x4xbf16> -> vector<256x16xbf16>
    %33 = arith.index_cast %arg1 : i32 to index
    %c0_20 = arith.constant 0 : index
    %c0_21 = arith.constant 0 : index
    %c0_22 = arith.constant 0 : index
    %34 = vector.load %arg3[%33, %c0_20, %c0_21, %c0_22] : memref<2x2x16x128xbf16, #tpu.memory_space<vmem>>, vector<1x1x16x128xbf16>
    %35 = vector.shape_cast %34 : vector<1x1x16x128xbf16> to vector<16x128xbf16>
    %cst_23 = arith.constant dense<0.000000e+00> : vector<256x128xf32>
    %36 = tpu.matmul %32, %35, %cst_23 {dimension_numbers = #tpu.dot_dimension_numbers<[1], [0], [0], [1], [0, 0, 1, 1], [], []>} : vector<256x16xbf16>, vector<16x128xbf16>, vector<256x128xf32> -> vector<256x128xf32>
    %cst_24 = arith.constant 0.000000e+00 : f32
    %37 = vector.broadcast %cst_24 : f32 to vector<256x128xf32>
    %38 = arith.maximumf %36, %37 : vector<256x128xf32>
    %cst_25 = arith.constant dense<0.000000e+00> : vector<128xf32>
    %39 = vector.multi_reduction <add>, %38, %cst_25 [0] : vector<256x128xf32> to vector<128xf32>
    %40 = vector.shape_cast %39 : vector<128xf32> to vector<1x128xf32>
    %41 = arith.addf %30, %40 : vector<1x128xf32>
    %42 = arith.mulf %38, %38 : vector<256x128xf32>
    %cst_26 = arith.constant dense<0.000000e+00> : vector<128xf32>
    %43 = vector.multi_reduction <add>, %42, %cst_26 [0] : vector<256x128xf32> to vector<128xf32>
    %44 = vector.shape_cast %43 : vector<128xf32> to vector<1x128xf32>
    %45 = arith.addf %31, %44 : vector<1x128xf32>
    %46 = vector.shape_cast %38 : vector<256x128xf32> to vector<16x16x128xf32>
    %47 = arith.truncf %46 : vector<16x16x128xf32> to vector<16x16x128xbf16>
    %c0_27 = arith.constant 0 : index
    %c0_28 = arith.constant 0 : index
    %c0_29 = arith.constant 0 : index
    %c0_30 = arith.constant 0 : index
    %c0_31 = arith.constant 0 : index
    %48 = vector.load %arg4[%c0_27, %c0_28, %c0_29, %c0_30, %c0_31] : memref<1x16x1x16x256xbf16, #tpu.memory_space<vmem>>, vector<1x16x1x16x128xbf16>
    %49 = vector.shape_cast %48 : vector<1x16x1x16x128xbf16> to vector<16x16x128xbf16>
    %50 = vector.shape_cast %47 : vector<16x16x128xbf16> to vector<1x16x1x16x128xbf16>
    tpu.vector_store %arg4[%c0_27, %c0_28, %c0_29, %c0_30, %c0_31], %50 {strides = array<i32>} : memref<1x16x1x16x256xbf16, #tpu.memory_space<vmem>>, vector<1x16x1x16x128xbf16>,
    %51 = tpu.concatenate %9, %14, %24, %29 in 1 : vector<256x4xbf16>, vector<256x4xbf16>, vector<256x4xbf16>, vector<256x4xbf16> -> vector<256x16xbf16>
    %52 = arith.index_cast %arg1 : i32 to index
    %c1_32 = arith.constant 1 : index
    %c0_33 = arith.constant 0 : index
    %c0_34 = arith.constant 0 : index
    %53 = vector.load %arg3[%52, %c1_32, %c0_33, %c0_34] : memref<2x2x16x128xbf16, #tpu.memory_space<vmem>>, vector<1x1x16x128xbf16>
    %54 = vector.shape_cast %53 : vector<1x1x16x128xbf16> to vector<16x128xbf16>
    %cst_35 = arith.constant dense<0.000000e+00> : vector<256x128xf32>
    %55 = tpu.matmul %51, %54, %cst_35 {dimension_numbers = #tpu.dot_dimension_numbers<[1], [0], [0], [1], [0, 0, 1, 1], [], []>} : vector<256x16xbf16>, vector<16x128xbf16>, vector<256x128xf32> -> vector<256x128xf32>
    %cst_36 = arith.constant 0.000000e+00 : f32
    %56 = vector.broadcast %cst_36 : f32 to vector<256x128xf32>
    %57 = arith.maximumf %55, %56 : vector<256x128xf32>
    %cst_37 = arith.constant dense<0.000000e+00> : vector<128xf32>
    %58 = vector.multi_reduction <add>, %57, %cst_37 [0] : vector<256x128xf32> to vector<128xf32>
    %59 = vector.shape_cast %58 : vector<128xf32> to vector<1x128xf32>
    %60 = arith.addf %41, %59 : vector<1x128xf32>
    %61 = arith.mulf %57, %57 : vector<256x128xf32>
    %cst_38 = arith.constant dense<0.000000e+00> : vector<128xf32>
    %62 = vector.multi_reduction <add>, %61, %cst_38 [0] : vector<256x128xf32> to vector<128xf32>
    %63 = vector.shape_cast %62 : vector<128xf32> to vector<1x128xf32>
    %64 = arith.addf %45, %63 : vector<1x128xf32>
    %65 = vector.shape_cast %57 : vector<256x128xf32> to vector<16x16x128xf32>
    %66 = arith.truncf %65 : vector<16x16x128xf32> to vector<16x16x128xbf16>
    %c0_39 = arith.constant 0 : index
    %c0_40 = arith.constant 0 : index
    %c0_41 = arith.constant 0 : index
    %c0_42 = arith.constant 0 : index
    %c128 = arith.constant 128 : index
    %67 = vector.load %arg4[%c0_39, %c0_40, %c0_41, %c0_42, %c128] : memref<1x16x1x16x256xbf16, #tpu.memory_space<vmem>>, vector<1x16x1x16x128xbf16>
    %68 = vector.shape_cast %67 : vector<1x16x1x16x128xbf16> to vector<16x16x128xbf16>
    %69 = vector.shape_cast %66 : vector<16x16x128xbf16> to vector<1x16x1x16x128xbf16>
    tpu.vector_store %arg4[%c0_39, %c0_40, %c0_41, %c0_42, %c128], %69 {strides = array<i32>} : memref<1x16x1x16x256xbf16, #tpu.memory_space<vmem>>, vector<1x16x1x16x128xbf16>,
    %c0_43 = arith.constant 0 : index
    %c0_44 = arith.constant 0 : index
    %c0_45 = arith.constant 0 : index
    %c0_46 = arith.constant 0 : index
    %70 = vector.load %arg5[%c0_43, %c0_44, %c0_45, %c0_46] : memref<1x1x2x128xf32, #tpu.memory_space<vmem>>, vector<1x1x1x128xf32>
    %71 = vector.shape_cast %70 : vector<1x1x1x128xf32> to vector<1x128xf32>
    %72 = vector.shape_cast %60 : vector<1x128xf32> to vector<1x1x1x128xf32>
    tpu.vector_store %arg5[%c0_43, %c0_44, %c0_45, %c0_46], %72 {strides = array<i32>} : memref<1x1x2x128xf32, #tpu.memory_space<vmem>>, vector<1x1x1x128xf32>,
    %c0_47 = arith.constant 0 : index
    %c0_48 = arith.constant 0 : index
    %c1_49 = arith.constant 1 : index
    %c0_50 = arith.constant 0 : index
    %73 = vector.load %arg5[%c0_47, %c0_48, %c1_49, %c0_50] : memref<1x1x2x128xf32, #tpu.memory_space<vmem>>, vector<1x1x1x128xf32>
    %74 = vector.shape_cast %73 : vector<1x1x1x128xf32> to vector<1x128xf32>
    %75 = vector.shape_cast %64 : vector<1x128xf32> to vector<1x1x1x128xf32>
    tpu.vector_store %arg5[%c0_47, %c0_48, %c1_49, %c0_50], %75 {strides = array<i32>} : memref<1x1x2x128xf32, #tpu.memory_space<vmem>>, vector<1x1x1x128xf32>,
    return
  }
  func.func @transform_0(%arg0: i32, %arg1: i32) -> (i32, i32, i32, i32) {
    %c0_i32 = arith.constant 0 : i32
    %c0_i32_0 = arith.constant 0 : i32
    %c0_i32_1 = arith.constant 0 : i32
    %c0_i32_2 = arith.constant 0 : i32
    return %arg0, %c0_i32, %c0_i32_0, %c0_i32_1 : i32, i32, i32, i32
  }
  func.func @transform_1(%arg0: i32, %arg1: i32) -> (i32, i32, i32, i32) {
    %c0_i32 = arith.constant 0 : i32
    %c0_i32_0 = arith.constant 0 : i32
    %c0_i32_1 = arith.constant 0 : i32
    %c0_i32_2 = arith.constant 0 : i32
    %c0_i32_3 = arith.constant 0 : i32
    return %c0_i32, %c0_i32_0, %c0_i32_1, %c0_i32_2 : i32, i32, i32, i32
  }
  func.func @transform_2(%arg0: i32, %arg1: i32) -> (i32, i32, i32, i32, i32) {
    %c0_i32 = arith.constant 0 : i32
    %c0_i32_0 = arith.constant 0 : i32
    %c0_i32_1 = arith.constant 0 : i32
    %c0_i32_2 = arith.constant 0 : i32
    return %arg0, %c0_i32, %arg1, %c0_i32_0, %c0_i32_1 : i32, i32, i32, i32, i32
  }
  func.func @transform_3(%arg0: i32, %arg1: i32) -> (i32, i32, i32, i32) {
    %c0_i32 = arith.constant 0 : i32
    %c0_i32_0 = arith.constant 0 : i32
    %c0_i32_1 = arith.constant 0 : i32
    return %arg0, %arg1, %c0_i32, %c0_i32_0 : i32, i32, i32, i32
  }
}

</mosaic_0001>

<llo_original>
// kernel: deconv_block_forward.1
$region0: #{deconv_block_forward.1}
  #allocation0 [shape = 'u32[]', space=smem, size = 0x4, offset = 0x4, fixed_abs, tag = 'smem constant byte address 0x4 - core index']
  #allocation1 [shape = 'u32[144,128]{1,0:T(1,128)}', space=vmem, size = 0x12000, scoped, tag = 'internal scratch']
  %s0 = inlined_call_operand.vmem [shape: bf16[2,18,18,4], index: 0, kind: input, shape index: {}]
  %s1 = inlined_call_operand.vmem [shape: bf16[2,2,16,128], index: 1, kind: input, shape index: {}]
  %s2 = inlined_call_operand.vmem [shape: bf16[2,16,2,16,256], index: 2, kind: output, shape index: {0}]
  %s3 = inlined_call_operand.vmem [shape: f32[2,2,2,128], index: 3, kind: output, shape index: {1}]
  %4 = xla_tuple %s2, %s3
  %s5 = sld [smem:[#allocation0]]
  $region83: #{deconv_block_forward.1} parent=0
    _
  %s7 = ssub.s32 1, %s5
  %s8 = scalar_select 0, %s7, %s5
  $region1: #{deconv_block_forward.1} parent=0
    #allocation2 [shape = 'u8[262144]{0}', space=vmem, size = 0x40000, scoped, tag = 'output window, operand 0']
    loop: start=0, step=1, limit=6
    $region2: #{deconv_block_forward.1} parent=1 // loop_pre_header
      _
    $region3: #{deconv_block_forward.1} parent=1 // loop_header
      %s10 = sphi 0, %s14
      %p11 = scmp.ge.s32.totalorder %s10, 6
      %s17 = sphi 0, %s29
      %s18 = sphi 0, %s25
      %s19 = sphi 0, %s17
      %s20 = sphi 0, %s18
      %s21 = sphi 0, %s19
      %s22 = sphi 0, %s20
      %s32 = sphi 0, %s34
      %s35 = sphi 0, %s32
      %s36 = sphi 0, %s35
      %s52 = sphi 0, %s36
      %s56 = sphi 0, %s56
      %s58 = sphi 0, %s56
      %s59 = sphi 0, %s58
      %s73 = sphi 0, %s59
      %s81 = sphi 0, %s83
      %s84 = sphi 0, %s81
      %s85 = sphi 0, %s84
      %s101 = sphi 0, %s85
      %s109 = sphi 0, %s111
      %s112 = sphi 0, %s109
      %s113 = sphi 0, %s112
      %s129 = sphi 0, %s113
    $region4: #{deconv_block_forward.1} parent=1 // loop_header_branch
      %13 = sbr.rel (%p11) target = $region8
    $region5: #{deconv_block_forward.1} parent=1 // loop_body
      %s15 = ssub.s32 %s10, 1
      %s16 = ssub.s32 %s10, 2
      %s23 = sadd.s32 1, %s18
      %p24 = scmp.ge.s32.totalorder %s23, 2
      %s25 = scalar_select %p24, 0, %s23
      %s26 = sadd.s32 1, %s17
      %s27 = scalar_select %p24, %s26, %s17
      %p28 = scmp.ge.s32.totalorder %s27, 2
      %s29 = scalar_select %p28, 0, %s27
      %s30 = ssub.s32 %s17, %s29
      %p31 = scmp.eq.s32.totalorder %s30, 0
      %s33 = sadd.s32 %s32, 1
      %s34 = scalar_select %p31, %s32, %s33
      %p37 = pneg %p31
      %p38 = scmp.eq.s32.totalorder %s10, 3
      %p39 = por %p37, %p38
      %p40 = scmp.ne.s32.totalorder %s32, %s35
      %p41 = scmp.eq.s32.totalorder %s10, 0
      %p42 = por %p40, %p41
      %p43 = scmp.ne.s32.totalorder %s32, %s35
      %p44 = scmp.eq.s32.totalorder %s15, 3
      %p45 = por %p43, %p44
      %p46 = scmp.ne.s32.totalorder %s35, %s36
      %p47 = scmp.eq.s32.totalorder %s15, 0
      %p48 = por %p46, %p47
      %p49 = scmp.ne.s32.totalorder %s35, %s36
      %p50 = scmp.eq.s32.totalorder %s16, 3
      %p51 = por %p49, %p50
      %p53 = scmp.ne.s32.totalorder %s36, %s52
      %p54 = scmp.eq.s32.totalorder %s16, 0
      %p55 = por %p53, %p54
      %s57 = sadd.s32 %s56, 1
      %p60 = scmp.eq.s32.totalorder %s10, 3
      %p61 = scmp.ne.s32.totalorder %s56, %s58
      %p62 = scmp.eq.s32.totalorder %s10, 0
      %p63 = por %p61, %p62
      %p64 = scmp.ne.s32.totalorder %s56, %s58
      %p65 = scmp.eq.s32.totalorder %s15, 3
      %p66 = por %p64, %p65
      %p67 = scmp.ne.s32.totalorder %s58, %s59
      %p68 = scmp.eq.s32.totalorder %s15, 0
      %p69 = por %p67, %p68
      %p70 = scmp.ne.s32.totalorder %s58, %s59
      %p71 = scmp.eq.s32.totalorder %s16, 3
      %p72 = por %p70, %p71
      %p74 = scmp.ne.s32.totalorder %s59, %s73
      %p75 = scmp.eq.s32.totalorder %s16, 0
      %p76 = por %p74, %p75
      %s77 = ssub.s32 %s17, %s29
      %s78 = ssub.s32 %s18, %s25
      %s79 = sor.u32 %s77, %s78
      %p80 = scmp.eq.s32.totalorder %s79, 0
      %s82 = sadd.s32 %s81, 1
      %s83 = scalar_select %p80, %s81, %s82
      %p86 = pneg %p80
      %p87 = scmp.eq.s32.totalorder %s10, 3
      %p88 = por %p86, %p87
      %p89 = scmp.ne.s32.totalorder %s81, %s84
      %p90 = scmp.eq.s32.totalorder %s10, 0
      %p91 = por %p89, %p90
      %p92 = scmp.ne.s32.totalorder %s81, %s84
      %p93 = scmp.eq.s32.totalorder %s15, 3
      %p94 = por %p92, %p93
      %p95 = scmp.ne.s32.totalorder %s84, %s85
      %p96 = scmp.eq.s32.totalorder %s15, 0
      %p97 = por %p95, %p96
      %p98 = scmp.ne.s32.totalorder %s84, %s85
      %p99 = scmp.eq.s32.totalorder %s16, 3
      %p100 = por %p98, %p99
      %p102 = scmp.ne.s32.totalorder %s85, %s101
      %p103 = scmp.eq.s32.totalorder %s16, 0
      %p104 = por %p102, %p103
      %s105 = ssub.s32 %s17, %s29
      %s106 = ssub.s32 %s18, %s25
      %s107 = sor.u32 %s105, %s106
      %p108 = scmp.eq.s32.totalorder %s107, 0
      %s110 = sadd.s32 %s109, 1
      %s111 = scalar_select %p108, %s109, %s110
      %p114 = pneg %p108
      %p115 = scmp.eq.s32.totalorder %s10, 3
      %p116 = por %p114, %p115
      %p117 = scmp.ne.s32.totalorder %s109, %s112
      %p118 = scmp.eq.s32.totalorder %s10, 0
      %p119 = por %p117, %p118
      %p120 = scmp.ne.s32.totalorder %s109, %s112
      %p121 = scmp.eq.s32.totalorder %s15, 3
      %p122 = por %p120, %p121
      %p123 = scmp.ne.s32.totalorder %s112, %s113
      %p124 = scmp.eq.s32.totalorder %s15, 0
      %p125 = por %p123, %p124
      %p126 = scmp.ne.s32.totalorder %s112, %s113
      %p127 = scmp.eq.s32.totalorder %s16, 3
      %p128 = por %p126, %p127
      %p130 = scmp.ne.s32.totalorder %s113, %s129
      %p131 = scmp.eq.s32.totalorder %s16, 0
      %p132 = por %p130, %p131
      %p133 = scmp.le.s32.totalorder 1, %s10
      %p134 = scmp.lt.s32.totalorder %s10, 5
      %p135 = pnand %p133, %p134
      %p136 = pneg %p135
      // Predicated region
      $region9: #{deconv_block_forward.1} parent=5 // pred_check
        _
      $region10: #{deconv_block_forward.1} parent=5 // pred_check_branch
        %138 = sbr.rel (%p135) target = $region12
      $region11: #{deconv_block_forward.1} parent=5 // pred_region
        %s139 = ssub.s32 %s10, 1
        // Predicated region
        $region13: #{deconv_block_forward.1} parent=11 // pred_check
          %p140 = pneg %p69
        $region14: #{deconv_block_forward.1} parent=11 // pred_check_branch
          %142 = sbr.rel (%p140) target = $region16
        $region15: #{deconv_block_forward.1} parent=11 // pred_region
          _
        $region16: #{deconv_block_forward.1} parent=11 // pred_fallthru
          _
      $region12: #{deconv_block_forward.1} parent=5 // pred_fallthru
        _
      %p143 = scmp.lt.s32.totalorder %s10, 4
      // Predicated region
      $region17: #{deconv_block_forward.1} parent=5 // pred_check
        %p144 = pneg %p143
      $region18: #{deconv_block_forward.1} parent=5 // pred_check_branch
        %146 = sbr.rel (%p144) target = $region20
      $region19: #{deconv_block_forward.1} parent=5 // pred_region
        // Predicated region
        $region21: #{deconv_block_forward.1} parent=19 // pred_check
          %p147 = pneg %p42
        $region22: #{deconv_block_forward.1} parent=19 // pred_check_branch
          %149 = sbr.rel (%p147) target = $region24
        $region23: #{deconv_block_forward.1} parent=19 // pred_region
          %p150 = scmp.lt.s32.totalorder %s17, 1
          %s151 = scalar_select %p150, %s17, 1
          %s152 = smul.addr %s151, 54
          %s153 = smul.addr %s152, 4
          %s154 = scalar_lea.vmem %s0, %s153
        $region24: #{deconv_block_forward.1} parent=19 // pred_fallthru
          _
      $region20: #{deconv_block_forward.1} parent=5 // pred_fallthru
        _
      %p155 = scmp.le.s32.totalorder 1, %s10
      %p156 = scmp.lt.s32.totalorder %s10, 5
      %p157 = pnand %p155, %p156
      %p158 = pneg %p157
      // Predicated region
      $region25: #{deconv_block_forward.1} parent=5 // pred_check
        _
      $region26: #{deconv_block_forward.1} parent=5 // pred_check_branch
        %160 = sbr.rel (%p157) target = $region28
      $region27: #{deconv_block_forward.1} parent=5 // pred_region
        %s161 = ssub.s32 %s10, 1
        %p162 = scmp.lt.s32.totalorder %s19, 1
        %s163 = scalar_select %p162, %s19, 1
        %s164 = smul.addr %s163, 54
        %s165 = smul.addr %s164, 4
        %s166 = scalar_lea.vmem %s0, %s165
        %p167 = pneg %p48
        %p168 = pneg %p45
        %p169 = pneg %p69
        %p170 = pneg %p66
        %p171 = pneg %p97
        %p172 = pneg %p94
        %s173 = sand.u32 %s84, 1
        %s174 = sand.u32 %s84, 1
        %s175 = smul.addr %s174, 256
        %s176 = scalar_lea.vmem [#allocation2], %s175
        %p177 = pneg %p125
        %p178 = pneg %p122
        %p179 = scmp.lt.s32.totalorder %s19, 1
        %s180 = scalar_select %p179, %s19, 1
        %p181 = scmp.lt.s32.totalorder %s20, 1
        %s182 = scalar_select %p181, %s20, 1
        %s183 = smul.addr %s180, 2
        %s184 = sadd.s32 %s182, %s183
        %s185 = smul.addr %s184, 2
        %s186 = scalar_lea.vmem %s3, %s185
        %p187 = scmp.lt.s32.totalorder %s19, 1
        %s188 = scalar_select %p187, %s19, 1
        %s189 = smul.addr %s188, 54
        %s190 = smul.addr %s189, 4
        %s191 = scalar_lea.vmem %s0, %s190
        %p192 = scmp.lt.s32.totalorder %s19, 1
        %s193 = scalar_select %p192, %s19, 1
        %p194 = scmp.lt.s32.totalorder %s20, 1
        %s195 = scalar_select %p194, %s20, 1
        %s196 = smul.addr %s193, 2
        %s197 = sadd.s32 %s195, %s196
        %s198 = smul.addr %s197, 2
        %s199 = scalar_lea.vmem %s3, %s198
        %s201 = smul.u32 %s20, 3
        %s202 = smul.addr %s201, 4
        %s203 = scalar_lea.vmem %s191, %s202
        %v204 = vld [vmem:[%s203] sm:$0xf]
        %v205 = vld [vmem:[%s203 + $0x4] sm:$0xf]
        %v206 = vld [vmem:[%s203 + $0xc] sm:$0xf]
        %v207 = vld [vmem:[%s203 + $0x10] sm:$0xf]
        %v208 = vld [vmem:[%s203 + $0x18] sm:$0xf]
        %v209 = vld [vmem:[%s203 + $0x1c] sm:$0xf]
        %v210 = vld [vmem:[%s203 + $0x24] sm:$0xf]
        %v211 = vld [vmem:[%s203 + $0x28] sm:$0xf]
        %v212 = vld [vmem:[%s203 + $0x30] sm:$0xf]
        %v213 = vld [vmem:[%s203 + $0x34] sm:$0xf]
        %v214 = vld [vmem:[%s203 + $0x3c] sm:$0xf]
        %v215 = vld [vmem:[%s203 + $0x40] sm:$0xf]
        %v216 = vld [vmem:[%s203 + $0x48] sm:$0xf]
        %v217 = vld [vmem:[%s203 + $0x4c] sm:$0xf]
        %v218 = vld [vmem:[%s203 + $0x54] sm:$0xf]
        %v219 = vld [vmem:[%s203 + $0x58] sm:$0xf]
        %v220 = vld [vmem:[%s203 + $0x60] sm:$0xf]
        %v221 = vld [vmem:[%s203 + $0x64] sm:$0xf]
        %v222 = vld [vmem:[%s203 + $0x6c] sm:$0xf]
        %v223 = vld [vmem:[%s203 + $0x70] sm:$0xf]
        %v224 = vld [vmem:[%s203 + $0x78] sm:$0xf]
        %v225 = vld [vmem:[%s203 + $0x7c] sm:$0xf]
        %v226 = vld [vmem:[%s203 + $0x84] sm:$0xf]
        %v227 = vld [vmem:[%s203 + $0x88] sm:$0xf]
        %v228 = vld [vmem:[%s203 + $0x90] sm:$0xf]
        %v229 = vld [vmem:[%s203 + $0x94] sm:$0xf]
        %v230 = vld [vmem:[%s203 + $0x9c] sm:$0xf]
        %v231 = vld [vmem:[%s203 + $0xa0] sm:$0xf]
        %v232 = vld [vmem:[%s203 + $0xa8] sm:$0xf]
        %v233 = vld [vmem:[%s203 + $0xac] sm:$0xf]
        %v234 = vld [vmem:[%s203 + $0xb4] sm:$0xf]
        %v235 = vld [vmem:[%s203 + $0xb8] sm:$0xf]
        %v236 = vld [vmem:[%s203 + $0x8] sm:$0x1]
        %v237 = vld [vmem:[%s203 + $0x14] sm:$0x1]
        %v238 = vld [vmem:[%s203 + $0x20] sm:$0x1]
        %v239 = vld [vmem:[%s203 + $0x2c] sm:$0x1]
        %v240 = vld [vmem:[%s203 + $0x38] sm:$0x1]
        %v241 = vld [vmem:[%s203 + $0x44] sm:$0x1]
        %v242 = vld [vmem:[%s203 + $0x50] sm:$0x1]
        %v243 = vld [vmem:[%s203 + $0x5c] sm:$0x1]
        %v244 = vld [vmem:[%s203 + $0x68] sm:$0x1]
        %v245 = vld [vmem:[%s203 + $0x74] sm:$0x1]
        %v246 = vld [vmem:[%s203 + $0x80] sm:$0x1]
        %v247 = vld [vmem:[%s203 + $0x8c] sm:$0x1]
        %v248 = vld [vmem:[%s203 + $0x98] sm:$0x1]
        %v249 = vld [vmem:[%s203 + $0xa4] sm:$0x1]
        %v250 = vld [vmem:[%s203 + $0xb0] sm:$0x1]
        %v251 = vld [vmem:[%s203 + $0xbc] sm:$0x1]
        %vm252 = vsmask.f32 3328
        %vm253 = vsmask.f32 7440
        %vm254 = vmor %vm252, %vm253
        %v256 = vshrl.u32 %v204, 16
        %v258 = vrot.slane %v256, 4
        %v259 = vshll.u32 %v204, 16
        %v261 = vrot.slane %v259, 5
        %v262 = vor.u32 %v258, %v261
        %v263 = vrot.slane %v262, 4
        %v265 = vshll.u32 %v205, 16
        %v267 = vrot.slane %v265, 5
        %v268 = vsel %vm254, %v263, %v267
        %v269 = vshrl.u32 %v205, 16
        %v271 = vrot.slane %v269, 4
        %v272 = vor.u32 %v271, %v267
        %v273 = vrot.slane %v272, 4
        %v275 = vshll.u32 %v236, 16
        %v277 = vrot.slane %v275, 5
        %v278 = vsel %vm254, %v273, %v277
        %v280 = vshrl.u32 %v206, 16
        %v282 = vrot.slane %v280, 4
        %v283 = vshll.u32 %v206, 16
        %v285 = vrot.slane %v283, 5
        %v286 = vor.u32 %v282, %v285
        %v287 = vrot.slane %v286, 4
        %v289 = vshll.u32 %v207, 16
        %v291 = vrot.slane %v289, 5
        %v292 = vsel %vm254, %v287, %v291
        %v293 = vshrl.u32 %v207, 16
        %v295 = vrot.slane %v293, 4
        %v296 = vor.u32 %v295, %v291
        %v297 = vrot.slane %v296, 4
        %v299 = vshll.u32 %v237, 16
        %v301 = vrot.slane %v299, 5
        %v302 = vsel %vm254, %v297, %v301
        %v304 = vshrl.u32 %v208, 16
        %v306 = vrot.slane %v304, 4
        %v307 = vshll.u32 %v208, 16
        %v309 = vrot.slane %v307, 5
        %v310 = vor.u32 %v306, %v309
        %v311 = vrot.slane %v310, 4
        %v313 = vshll.u32 %v209, 16
        %v315 = vrot.slane %v313, 5
        %v316 = vsel %vm254, %v311, %v315
        %v317 = vshrl.u32 %v209, 16
        %v319 = vrot.slane %v317, 4
        %v320 = vor.u32 %v319, %v315
        %v321 = vrot.slane %v320, 4
        %v323 = vshll.u32 %v238, 16
        %v325 = vrot.slane %v323, 5
        %v326 = vsel %vm254, %v321, %v325
        %v328 = vshrl.u32 %v210, 16
        %v330 = vrot.slane %v328, 4
        %v331 = vshll.u32 %v210, 16
        %v333 = vrot.slane %v331, 5
        %v334 = vor.u32 %v330, %v333
        %v335 = vrot.slane %v334, 4
        %v337 = vshll.u32 %v211, 16
        %v339 = vrot.slane %v337, 5
        %v340 = vsel %vm254, %v335, %v339
        %v341 = vshrl.u32 %v211, 16
        %v343 = vrot.slane %v341, 4
        %v344 = vor.u32 %v343, %v339
        %v345 = vrot.slane %v344, 4
        %v347 = vshll.u32 %v239, 16
        %v349 = vrot.slane %v347, 5
        %v350 = vsel %vm254, %v345, %v349
        %v352 = vshrl.u32 %v212, 16
        %v354 = vrot.slane %v352, 4
        %v355 = vshll.u32 %v212, 16
        %v357 = vrot.slane %v355, 5
        %v358 = vor.u32 %v354, %v357
        %v359 = vrot.slane %v358, 4
        %v361 = vshll.u32 %v213, 16
        %v363 = vrot.slane %v361, 5
        %v364 = vsel %vm254, %v359, %v363
        %v365 = vshrl.u32 %v213, 16
        %v367 = vrot.slane %v365, 4
        %v368 = vor.u32 %v367, %v363
        %v369 = vrot.slane %v368, 4
        %v371 = vshll.u32 %v240, 16
        %v373 = vrot.slane %v371, 5
        %v374 = vsel %vm254, %v369, %v373
        %v376 = vshrl.u32 %v214, 16
        %v378 = vrot.slane %v376, 4
        %v379 = vshll.u32 %v214, 16
        %v381 = vrot.slane %v379, 5
        %v382 = vor.u32 %v378, %v381
        %v383 = vrot.slane %v382, 4
        %v385 = vshll.u32 %v215, 16
        %v387 = vrot.slane %v385, 5
        %v388 = vsel %vm254, %v383, %v387
        %v389 = vshrl.u32 %v215, 16
        %v391 = vrot.slane %v389, 4
        %v392 = vor.u32 %v391, %v387
        %v393 = vrot.slane %v392, 4
        %v395 = vshll.u32 %v241, 16
        %v397 = vrot.slane %v395, 5
        %v398 = vsel %vm254, %v393, %v397
        %v400 = vshrl.u32 %v216, 16
        %v402 = vrot.slane %v400, 4
        %v403 = vshll.u32 %v216, 16
        %v405 = vrot.slane %v403, 5
        %v406 = vor.u32 %v402, %v405
        %v407 = vrot.slane %v406, 4
        %v409 = vshll.u32 %v217, 16
        %v411 = vrot.slane %v409, 5
        %v412 = vsel %vm254, %v407, %v411
        %v413 = vshrl.u32 %v217, 16
        %v415 = vrot.slane %v413, 4
        %v416 = vor.u32 %v415, %v411
        %v417 = vrot.slane %v416, 4
        %v419 = vshll.u32 %v242, 16
        %v421 = vrot.slane %v419, 5
        %v422 = vsel %vm254, %v417, %v421
        %v424 = vshrl.u32 %v218, 16
        %v426 = vrot.slane %v424, 4
        %v427 = vshll.u32 %v218, 16
        %v429 = vrot.slane %v427, 5
        %v430 = vor.u32 %v426, %v429
        %v431 = vrot.slane %v430, 4
        %v433 = vshll.u32 %v219, 16
        %v435 = vrot.slane %v433, 5
        %v436 = vsel %vm254, %v431, %v435
        %v437 = vshrl.u32 %v219, 16
        %v439 = vrot.slane %v437, 4
        %v440 = vor.u32 %v439, %v435
        %v441 = vrot.slane %v440, 4
        %v443 = vshll.u32 %v243, 16
        %v445 = vrot.slane %v443, 5
        %v446 = vsel %vm254, %v441, %v445
        %v448 = vshrl.u32 %v220, 16
        %v450 = vrot.slane %v448, 4
        %v451 = vshll.u32 %v220, 16
        %v453 = vrot.slane %v451, 5
        %v454 = vor.u32 %v450, %v453
        %v455 = vrot.slane %v454, 4
        %v457 = vshll.u32 %v221, 16
        %v459 = vrot.slane %v457, 5
        %v460 = vsel %vm254, %v455, %v459
        %v461 = vshrl.u32 %v221, 16
        %v463 = vrot.slane %v461, 4
        %v464 = vor.u32 %v463, %v459
        %v465 = vrot.slane %v464, 4
        %v467 = vshll.u32 %v244, 16
        %v469 = vrot.slane %v467, 5
        %v470 = vsel %vm254, %v465, %v469
        %v472 = vshrl.u32 %v222, 16
        %v474 = vrot.slane %v472, 4
        %v475 = vshll.u32 %v222, 16
        %v477 = vrot.slane %v475, 5
        %v478 = vor.u32 %v474, %v477
        %v479 = vrot.slane %v478, 4
        %v481 = vshll.u32 %v223, 16
        %v483 = vrot.slane %v481, 5
        %v484 = vsel %vm254, %v479, %v483
        %v485 = vshrl.u32 %v223, 16
        %v487 = vrot.slane %v485, 4
        %v488 = vor.u32 %v487, %v483
        %v489 = vrot.slane %v488, 4
        %v491 = vshll.u32 %v245, 16
        %v493 = vrot.slane %v491, 5
        %v494 = vsel %vm254, %v489, %v493
        %v496 = vshrl.u32 %v224, 16
        %v498 = vrot.slane %v496, 4
        %v499 = vshll.u32 %v224, 16
        %v501 = vrot.slane %v499, 5
        %v502 = vor.u32 %v498, %v501
        %v503 = vrot.slane %v502, 4
        %v505 = vshll.u32 %v225, 16
        %v507 = vrot.slane %v505, 5
        %v508 = vsel %vm254, %v503, %v507
        %v509 = vshrl.u32 %v225, 16
        %v511 = vrot.slane %v509, 4
        %v512 = vor.u32 %v511, %v507
        %v513 = vrot.slane %v512, 4
        %v515 = vshll.u32 %v246, 16
        %v517 = vrot.slane %v515, 5
        %v518 = vsel %vm254, %v513, %v517
        %v520 = vshrl.u32 %v226, 16
        %v522 = vrot.slane %v520, 4
        %v523 = vshll.u32 %v226, 16
        %v525 = vrot.slane %v523, 5
        %v526 = vor.u32 %v522, %v525
        %v527 = vrot.slane %v526, 4
        %v529 = vshll.u32 %v227, 16
        %v531 = vrot.slane %v529, 5
        %v532 = vsel %vm254, %v527, %v531
        %v533 = vshrl.u32 %v227, 16
        %v535 = vrot.slane %v533, 4
        %v536 = vor.u32 %v535, %v531
        %v537 = vrot.slane %v536, 4
        %v539 = vshll.u32 %v247, 16
        %v541 = vrot.slane %v539, 5
        %v542 = vsel %vm254, %v537, %v541
        %v544 = vshrl.u32 %v228, 16
        %v546 = vrot.slane %v544, 4
        %v547 = vshll.u32 %v228, 16
        %v549 = vrot.slane %v547, 5
        %v550 = vor.u32 %v546, %v549
        %v551 = vrot.slane %v550, 4
        %v553 = vshll.u32 %v229, 16
        %v555 = vrot.slane %v553, 5
        %v556 = vsel %vm254, %v551, %v555
        %v557 = vshrl.u32 %v229, 16
        %v559 = vrot.slane %v557, 4
        %v560 = vor.u32 %v559, %v555
        %v561 = vrot.slane %v560, 4
        %v563 = vshll.u32 %v248, 16
        %v565 = vrot.slane %v563, 5
        %v566 = vsel %vm254, %v561, %v565
        %v568 = vshrl.u32 %v230, 16
        %v570 = vrot.slane %v568, 4
        %v571 = vshll.u32 %v230, 16
        %v573 = vrot.slane %v571, 5
        %v574 = vor.u32 %v570, %v573
        %v575 = vrot.slane %v574, 4
        %v577 = vshll.u32 %v231, 16
        %v579 = vrot.slane %v577, 5
        %v580 = vsel %vm254, %v575, %v579
        %v581 = vshrl.u32 %v231, 16
        %v583 = vrot.slane %v581, 4
        %v584 = vor.u32 %v583, %v579
        %v585 = vrot.slane %v584, 4
        %v587 = vshll.u32 %v249, 16
        %v589 = vrot.slane %v587, 5
        %v590 = vsel %vm254, %v585, %v589
        %v592 = vshrl.u32 %v232, 16
        %v594 = vrot.slane %v592, 4
        %v595 = vshll.u32 %v232, 16
        %v597 = vrot.slane %v595, 5
        %v598 = vor.u32 %v594, %v597
        %v599 = vrot.slane %v598, 4
        %v601 = vshll.u32 %v233, 16
        %v603 = vrot.slane %v601, 5
        %v604 = vsel %vm254, %v599, %v603
        %v605 = vshrl.u32 %v233, 16
        %v607 = vrot.slane %v605, 4
        %v608 = vor.u32 %v607, %v603
        %v609 = vrot.slane %v608, 4
        %v611 = vshll.u32 %v250, 16
        %v613 = vrot.slane %v611, 5
        %v614 = vsel %vm254, %v609, %v613
        %v616 = vshrl.u32 %v234, 16
        %v618 = vrot.slane %v616, 4
        %v619 = vshll.u32 %v234, 16
        %v621 = vrot.slane %v619, 5
        %v622 = vor.u32 %v618, %v621
        %v623 = vrot.slane %v622, 4
        %v625 = vshll.u32 %v235, 16
        %v627 = vrot.slane %v625, 5
        %v628 = vsel %vm254, %v623, %v627
        %v629 = vshrl.u32 %v235, 16
        %v631 = vrot.slane %v629, 4
        %v632 = vor.u32 %v631, %v627
        %v633 = vrot.slane %v632, 4
        %v635 = vshll.u32 %v251, 16
        %v637 = vrot.slane %v635, 5
        %v638 = vsel %vm254, %v633, %v637
        %v639 = vld [vmem:[%s203] sm:$0xe]
        %v640 = vld [vmem:[%s203 + $0xc] sm:$0xe]
        %v641 = vld [vmem:[%s203 + $0x18] sm:$0xe]
        %v642 = vld [vmem:[%s203 + $0x24] sm:$0xe]
        %v643 = vld [vmem:[%s203 + $0x30] sm:$0xe]
        %v644 = vld [vmem:[%s203 + $0x3c] sm:$0xe]
        %v645 = vld [vmem:[%s203 + $0x48] sm:$0xe]
        %v646 = vld [vmem:[%s203 + $0x54] sm:$0xe]
        %v647 = vld [vmem:[%s203 + $0x60] sm:$0xe]
        %v648 = vld [vmem:[%s203 + $0x6c] sm:$0xe]
        %v649 = vld [vmem:[%s203 + $0x78] sm:$0xe]
        %v650 = vld [vmem:[%s203 + $0x84] sm:$0xe]
        %v651 = vld [vmem:[%s203 + $0x90] sm:$0xe]
        %v652 = vld [vmem:[%s203 + $0x9c] sm:$0xe]
        %v653 = vld [vmem:[%s203 + $0xa8] sm:$0xe]
        %v654 = vld [vmem:[%s203 + $0xb4] sm:$0xe]
        %vm703 = vcmask 1042432
        %vm704 = vcmask 1046532
        %vm705 = vmor %vm703, %vm704
        %v706 = vrot.slane %v639, 5
        %v707 = vrot.slane %v706, 4
        %v708 = vrot.slane %v205, 5
        %v709 = vsel %vm705, %v707, %v708
        %v710 = vrot.slane %v708, 4
        %v711 = vrot.slane %v236, 5
        %v712 = vsel %vm705, %v710, %v711
        %v713 = vrot.slane %v640, 5
        %v714 = vrot.slane %v713, 4
        %v715 = vrot.slane %v207, 5
        %v716 = vsel %vm705, %v714, %v715
        %v717 = vrot.slane %v715, 4
        %v718 = vrot.slane %v237, 5
        %v719 = vsel %vm705, %v717, %v718
        %v720 = vrot.slane %v641, 5
        %v721 = vrot.slane %v720, 4
        %v722 = vrot.slane %v209, 5
        %v723 = vsel %vm705, %v721, %v722
        %v724 = vrot.slane %v722, 4
        %v725 = vrot.slane %v238, 5
        %v726 = vsel %vm705, %v724, %v725
        %v727 = vrot.slane %v642, 5
        %v728 = vrot.slane %v727, 4
        %v729 = vrot.slane %v211, 5
        %v730 = vsel %vm705, %v728, %v729
        %v731 = vrot.slane %v729, 4
        %v732 = vrot.slane %v239, 5
        %v733 = vsel %vm705, %v731, %v732
        %v734 = vrot.slane %v643, 5
        %v735 = vrot.slane %v734, 4
        %v736 = vrot.slane %v213, 5
        %v737 = vsel %vm705, %v735, %v736
        %v738 = vrot.slane %v736, 4
        %v739 = vrot.slane %v240, 5
        %v740 = vsel %vm705, %v738, %v739
        %v741 = vrot.slane %v644, 5
        %v742 = vrot.slane %v741, 4
        %v743 = vrot.slane %v215, 5
        %v744 = vsel %vm705, %v742, %v743
        %v745 = vrot.slane %v743, 4
        %v746 = vrot.slane %v241, 5
        %v747 = vsel %vm705, %v745, %v746
        %v748 = vrot.slane %v645, 5
        %v749 = vrot.slane %v748, 4
        %v750 = vrot.slane %v217, 5
        %v751 = vsel %vm705, %v749, %v750
        %v752 = vrot.slane %v750, 4
        %v753 = vrot.slane %v242, 5
        %v754 = vsel %vm705, %v752, %v753
        %v755 = vrot.slane %v646, 5
        %v756 = vrot.slane %v755, 4
        %v757 = vrot.slane %v219, 5
        %v758 = vsel %vm705, %v756, %v757
        %v759 = vrot.slane %v757, 4
        %v760 = vrot.slane %v243, 5
        %v761 = vsel %vm705, %v759, %v760
        %v762 = vrot.slane %v647, 5
        %v763 = vrot.slane %v762, 4
        %v764 = vrot.slane %v221, 5
        %v765 = vsel %vm705, %v763, %v764
        %v766 = vrot.slane %v764, 4
        %v767 = vrot.slane %v244, 5
        %v768 = vsel %vm705, %v766, %v767
        %v769 = vrot.slane %v648, 5
        %v770 = vrot.slane %v769, 4
        %v771 = vrot.slane %v223, 5
        %v772 = vsel %vm705, %v770, %v771
        %v773 = vrot.slane %v771, 4
        %v774 = vrot.slane %v245, 5
        %v775 = vsel %vm705, %v773, %v774
        %v776 = vrot.slane %v649, 5
        %v777 = vrot.slane %v776, 4
        %v778 = vrot.slane %v225, 5
        %v779 = vsel %vm705, %v777, %v778
        %v780 = vrot.slane %v778, 4
        %v781 = vrot.slane %v246, 5
        %v782 = vsel %vm705, %v780, %v781
        %v783 = vrot.slane %v650, 5
        %v784 = vrot.slane %v783, 4
        %v785 = vrot.slane %v227, 5
        %v786 = vsel %vm705, %v784, %v785
        %v787 = vrot.slane %v785, 4
        %v788 = vrot.slane %v247, 5
        %v789 = vsel %vm705, %v787, %v788
        %v790 = vrot.slane %v651, 5
        %v791 = vrot.slane %v790, 4
        %v792 = vrot.slane %v229, 5
        %v793 = vsel %vm705, %v791, %v792
        %v794 = vrot.slane %v792, 4
        %v795 = vrot.slane %v248, 5
        %v796 = vsel %vm705, %v794, %v795
        %v797 = vrot.slane %v652, 5
        %v798 = vrot.slane %v797, 4
        %v799 = vrot.slane %v231, 5
        %v800 = vsel %vm705, %v798, %v799
        %v801 = vrot.slane %v799, 4
        %v802 = vrot.slane %v249, 5
        %v803 = vsel %vm705, %v801, %v802
        %v804 = vrot.slane %v653, 5
        %v805 = vrot.slane %v804, 4
        %v806 = vrot.slane %v233, 5
        %v807 = vsel %vm705, %v805, %v806
        %v808 = vrot.slane %v806, 4
        %v809 = vrot.slane %v250, 5
        %v810 = vsel %vm705, %v808, %v809
        %v811 = vrot.slane %v654, 5
        %v812 = vrot.slane %v811, 4
        %v813 = vrot.slane %v235, 5
        %v814 = vsel %vm705, %v812, %v813
        %v815 = vrot.slane %v813, 4
        %v816 = vrot.slane %v251, 5
        %v817 = vsel %vm705, %v815, %v816
        %s818 = sadd.s32 %s20, 1
        %s819 = smul.u32 %s818, 3
        %s820 = smul.addr %s819, 4
        %s821 = scalar_lea.vmem %s191, %s820
        %v822 = vld [vmem:[%s821] sm:$0xf]
        %v823 = vld [vmem:[%s821 + $0x4] sm:$0xf]
        %v824 = vld [vmem:[%s821 + $0xc] sm:$0xf]
        %v825 = vld [vmem:[%s821 + $0x10] sm:$0xf]
        %v826 = vld [vmem:[%s821 + $0x18] sm:$0xf]
        %v827 = vld [vmem:[%s821 + $0x1c] sm:$0xf]
        %v828 = vld [vmem:[%s821 + $0x24] sm:$0xf]
        %v829 = vld [vmem:[%s821 + $0x28] sm:$0xf]
        %v830 = vld [vmem:[%s821 + $0x30] sm:$0xf]
        %v831 = vld [vmem:[%s821 + $0x34] sm:$0xf]
        %v832 = vld [vmem:[%s821 + $0x3c] sm:$0xf]
        %v833 = vld [vmem:[%s821 + $0x40] sm:$0xf]
        %v834 = vld [vmem:[%s821 + $0x48] sm:$0xf]
        %v835 = vld [vmem:[%s821 + $0x4c] sm:$0xf]
        %v836 = vld [vmem:[%s821 + $0x54] sm:$0xf]
        %v837 = vld [vmem:[%s821 + $0x58] sm:$0xf]
        %v838 = vld [vmem:[%s821 + $0x60] sm:$0xf]
        %v839 = vld [vmem:[%s821 + $0x64] sm:$0xf]
        %v840 = vld [vmem:[%s821 + $0x6c] sm:$0xf]
        %v841 = vld [vmem:[%s821 + $0x70] sm:$0xf]
        %v842 = vld [vmem:[%s821 + $0x78] sm:$0xf]
        %v843 = vld [vmem:[%s821 + $0x7c] sm:$0xf]
        %v844 = vld [vmem:[%s821 + $0x84] sm:$0xf]
        %v845 = vld [vmem:[%s821 + $0x88] sm:$0xf]
        %v846 = vld [vmem:[%s821 + $0x90] sm:$0xf]
        %v847 = vld [vmem:[%s821 + $0x94] sm:$0xf]
        %v848 = vld [vmem:[%s821 + $0x9c] sm:$0xf]
        %v849 = vld [vmem:[%s821 + $0xa0] sm:$0xf]
        %v850 = vld [vmem:[%s821 + $0xa8] sm:$0xf]
        %v851 = vld [vmem:[%s821 + $0xac] sm:$0xf]
        %v852 = vld [vmem:[%s821 + $0xb4] sm:$0xf]
        %v853 = vld [vmem:[%s821 + $0xb8] sm:$0xf]
        %v854 = vld [vmem:[%s821 + $0x8] sm:$0x1]
        %v855 = vld [vmem:[%s821 + $0x14] sm:$0x1]
        %v856 = vld [vmem:[%s821 + $0x20] sm:$0x1]
        %v857 = vld [vmem:[%s821 + $0x2c] sm:$0x1]
        %v858 = vld [vmem:[%s821 + $0x38] sm:$0x1]
        %v859 = vld [vmem:[%s821 + $0x44] sm:$0x1]
        %v860 = vld [vmem:[%s821 + $0x50] sm:$0x1]
        %v861 = vld [vmem:[%s821 + $0x5c] sm:$0x1]
        %v862 = vld [vmem:[%s821 + $0x68] sm:$0x1]
        %v863 = vld [vmem:[%s821 + $0x74] sm:$0x1]
        %v864 = vld [vmem:[%s821 + $0x80] sm:$0x1]
        %v865 = vld [vmem:[%s821 + $0x8c] sm:$0x1]
        %v866 = vld [vmem:[%s821 + $0x98] sm:$0x1]
        %v867 = vld [vmem:[%s821 + $0xa4] sm:$0x1]
        %v868 = vld [vmem:[%s821 + $0xb0] sm:$0x1]
        %v869 = vld [vmem:[%s821 + $0xbc] sm:$0x1]
        %v871 = vshrl.u32 %v822, 16
        %v873 = vrot.slane %v871, 4
        %v874 = vshll.u32 %v822, 16
        %v876 = vrot.slane %v874, 5
        %v877 = vor.u32 %v873, %v876
        %v878 = vrot.slane %v877, 4
        %v880 = vshll.u32 %v823, 16
        %v882 = vrot.slane %v880, 5
        %v883 = vsel %vm254, %v878, %v882
        %v884 = vshrl.u32 %v823, 16
        %v886 = vrot.slane %v884, 4
        %v887 = vor.u32 %v886, %v882
        %v888 = vrot.slane %v887, 4
        %v890 = vshll.u32 %v854, 16
        %v892 = vrot.slane %v890, 5
        %v893 = vsel %vm254, %v888, %v892
        %v895 = vshrl.u32 %v824, 16
        %v897 = vrot.slane %v895, 4
        %v898 = vshll.u32 %v824, 16
        %v900 = vrot.slane %v898, 5
        %v901 = vor.u32 %v897, %v900
        %v902 = vrot.slane %v901, 4
        %v904 = vshll.u32 %v825, 16
        %v906 = vrot.slane %v904, 5
        %v907 = vsel %vm254, %v902, %v906
        %v908 = vshrl.u32 %v825, 16
        %v910 = vrot.slane %v908, 4
        %v911 = vor.u32 %v910, %v906
        %v912 = vrot.slane %v911, 4
        %v914 = vshll.u32 %v855, 16
        %v916 = vrot.slane %v914, 5
        %v917 = vsel %vm254, %v912, %v916
        %v919 = vshrl.u32 %v826, 16
        %v921 = vrot.slane %v919, 4
        %v922 = vshll.u32 %v826, 16
        %v924 = vrot.slane %v922, 5
        %v925 = vor.u32 %v921, %v924
        %v926 = vrot.slane %v925, 4
        %v928 = vshll.u32 %v827, 16
        %v930 = vrot.slane %v928, 5
        %v931 = vsel %vm254, %v926, %v930
        %v932 = vshrl.u32 %v827, 16
        %v934 = vrot.slane %v932, 4
        %v935 = vor.u32 %v934, %v930
        %v936 = vrot.slane %v935, 4
        %v938 = vshll.u32 %v856, 16
        %v940 = vrot.slane %v938, 5
        %v941 = vsel %vm254, %v936, %v940
        %v943 = vshrl.u32 %v828, 16
        %v945 = vrot.slane %v943, 4
        %v946 = vshll.u32 %v828, 16
        %v948 = vrot.slane %v946, 5
        %v949 = vor.u32 %v945, %v948
        %v950 = vrot.slane %v949, 4
        %v952 = vshll.u32 %v829, 16
        %v954 = vrot.slane %v952, 5
        %v955 = vsel %vm254, %v950, %v954
        %v956 = vshrl.u32 %v829, 16
        %v958 = vrot.slane %v956, 4
        %v959 = vor.u32 %v958, %v954
        %v960 = vrot.slane %v959, 4
        %v962 = vshll.u32 %v857, 16
        %v964 = vrot.slane %v962, 5
        %v965 = vsel %vm254, %v960, %v964
        %v967 = vshrl.u32 %v830, 16
        %v969 = vrot.slane %v967, 4
        %v970 = vshll.u32 %v830, 16
        %v972 = vrot.slane %v970, 5
        %v973 = vor.u32 %v969, %v972
        %v974 = vrot.slane %v973, 4
        %v976 = vshll.u32 %v831, 16
        %v978 = vrot.slane %v976, 5
        %v979 = vsel %vm254, %v974, %v978
        %v980 = vshrl.u32 %v831, 16
        %v982 = vrot.slane %v980, 4
        %v983 = vor.u32 %v982, %v978
        %v984 = vrot.slane %v983, 4
        %v986 = vshll.u32 %v858, 16
        %v988 = vrot.slane %v986, 5
        %v989 = vsel %vm254, %v984, %v988
        %v991 = vshrl.u32 %v832, 16
        %v993 = vrot.slane %v991, 4
        %v994 = vshll.u32 %v832, 16
        %v996 = vrot.slane %v994, 5
        %v997 = vor.u32 %v993, %v996
        %v998 = vrot.slane %v997, 4
        %v1000 = vshll.u32 %v833, 16
        %v1002 = vrot.slane %v1000, 5
        %v1003 = vsel %vm254, %v998, %v1002
        %v1004 = vshrl.u32 %v833, 16
        %v1006 = vrot.slane %v1004, 4
        %v1007 = vor.u32 %v1006, %v1002
        %v1008 = vrot.slane %v1007, 4
        %v1010 = vshll.u32 %v859, 16
        %v1012 = vrot.slane %v1010, 5
        %v1013 = vsel %vm254, %v1008, %v1012
        %v1015 = vshrl.u32 %v834, 16
        %v1017 = vrot.slane %v1015, 4
        %v1018 = vshll.u32 %v834, 16
        %v1020 = vrot.slane %v1018, 5
        %v1021 = vor.u32 %v1017, %v1020
        %v1022 = vrot.slane %v1021, 4
        %v1024 = vshll.u32 %v835, 16
        %v1026 = vrot.slane %v1024, 5
        %v1027 = vsel %vm254, %v1022, %v1026
        %v1028 = vshrl.u32 %v835, 16
        %v1030 = vrot.slane %v1028, 4
        %v1031 = vor.u32 %v1030, %v1026
        %v1032 = vrot.slane %v1031, 4
        %v1034 = vshll.u32 %v860, 16
        %v1036 = vrot.slane %v1034, 5
        %v1037 = vsel %vm254, %v1032, %v1036
        %v1039 = vshrl.u32 %v836, 16
        %v1041 = vrot.slane %v1039, 4
        %v1042 = vshll.u32 %v836, 16
        %v1044 = vrot.slane %v1042, 5
        %v1045 = vor.u32 %v1041, %v1044
        %v1046 = vrot.slane %v1045, 4
        %v1048 = vshll.u32 %v837, 16
        %v1050 = vrot.slane %v1048, 5
        %v1051 = vsel %vm254, %v1046, %v1050
        %v1052 = vshrl.u32 %v837, 16
        %v1054 = vrot.slane %v1052, 4
        %v1055 = vor.u32 %v1054, %v1050
        %v1056 = vrot.slane %v1055, 4
        %v1058 = vshll.u32 %v861, 16
        %v1060 = vrot.slane %v1058, 5
        %v1061 = vsel %vm254, %v1056, %v1060
        %v1063 = vshrl.u32 %v838, 16
        %v1065 = vrot.slane %v1063, 4
        %v1066 = vshll.u32 %v838, 16
        %v1068 = vrot.slane %v1066, 5
        %v1069 = vor.u32 %v1065, %v1068
        %v1070 = vrot.slane %v1069, 4
        %v1072 = vshll.u32 %v839, 16
        %v1074 = vrot.slane %v1072, 5
        %v1075 = vsel %vm254, %v1070, %v1074
        %v1076 = vshrl.u32 %v839, 16
        %v1078 = vrot.slane %v1076, 4
        %v1079 = vor.u32 %v1078, %v1074
        %v1080 = vrot.slane %v1079, 4
        %v1082 = vshll.u32 %v862, 16
        %v1084 = vrot.slane %v1082, 5
        %v1085 = vsel %vm254, %v1080, %v1084
        %v1087 = vshrl.u32 %v840, 16
        %v1089 = vrot.slane %v1087, 4
        %v1090 = vshll.u32 %v840, 16
        %v1092 = vrot.slane %v1090, 5
        %v1093 = vor.u32 %v1089, %v1092
        %v1094 = vrot.slane %v1093, 4
        %v1096 = vshll.u32 %v841, 16
        %v1098 = vrot.slane %v1096, 5
        %v1099 = vsel %vm254, %v1094, %v1098
        %v1100 = vshrl.u32 %v841, 16
        %v1102 = vrot.slane %v1100, 4
        %v1103 = vor.u32 %v1102, %v1098
        %v1104 = vrot.slane %v1103, 4
        %v1106 = vshll.u32 %v863, 16
        %v1108 = vrot.slane %v1106, 5
        %v1109 = vsel %vm254, %v1104, %v1108
        %v1111 = vshrl.u32 %v842, 16
        %v1113 = vrot.slane %v1111, 4
        %v1114 = vshll.u32 %v842, 16
        %v1116 = vrot.slane %v1114, 5
        %v1117 = vor.u32 %v1113, %v1116
        %v1118 = vrot.slane %v1117, 4
        %v1120 = vshll.u32 %v843, 16
        %v1122 = vrot.slane %v1120, 5
        %v1123 = vsel %vm254, %v1118, %v1122
        %v1124 = vshrl.u32 %v843, 16
        %v1126 = vrot.slane %v1124, 4
        %v1127 = vor.u32 %v1126, %v1122
        %v1128 = vrot.slane %v1127, 4
        %v1130 = vshll.u32 %v864, 16
        %v1132 = vrot.slane %v1130, 5
        %v1133 = vsel %vm254, %v1128, %v1132
        %v1135 = vshrl.u32 %v844, 16
        %v1137 = vrot.slane %v1135, 4
        %v1138 = vshll.u32 %v844, 16
        %v1140 = vrot.slane %v1138, 5
        %v1141 = vor.u32 %v1137, %v1140
        %v1142 = vrot.slane %v1141, 4
        %v1144 = vshll.u32 %v845, 16
        %v1146 = vrot.slane %v1144, 5
        %v1147 = vsel %vm254, %v1142, %v1146
        %v1148 = vshrl.u32 %v845, 16
        %v1150 = vrot.slane %v1148, 4
        %v1151 = vor.u32 %v1150, %v1146
        %v1152 = vrot.slane %v1151, 4
        %v1154 = vshll.u32 %v865, 16
        %v1156 = vrot.slane %v1154, 5
        %v1157 = vsel %vm254, %v1152, %v1156
        %v1159 = vshrl.u32 %v846, 16
        %v1161 = vrot.slane %v1159, 4
        %v1162 = vshll.u32 %v846, 16
        %v1164 = vrot.slane %v1162, 5
        %v1165 = vor.u32 %v1161, %v1164
        %v1166 = vrot.slane %v1165, 4
        %v1168 = vshll.u32 %v847, 16
        %v1170 = vrot.slane %v1168, 5
        %v1171 = vsel %vm254, %v1166, %v1170
        %v1172 = vshrl.u32 %v847, 16
        %v1174 = vrot.slane %v1172, 4
        %v1175 = vor.u32 %v1174, %v1170
        %v1176 = vrot.slane %v1175, 4
        %v1178 = vshll.u32 %v866, 16
        %v1180 = vrot.slane %v1178, 5
        %v1181 = vsel %vm254, %v1176, %v1180
        %v1183 = vshrl.u32 %v848, 16
        %v1185 = vrot.slane %v1183, 4
        %v1186 = vshll.u32 %v848, 16
        %v1188 = vrot.slane %v1186, 5
        %v1189 = vor.u32 %v1185, %v1188
        %v1190 = vrot.slane %v1189, 4
        %v1192 = vshll.u32 %v849, 16
        %v1194 = vrot.slane %v1192, 5
        %v1195 = vsel %vm254, %v1190, %v1194
        %v1196 = vshrl.u32 %v849, 16
        %v1198 = vrot.slane %v1196, 4
        %v1199 = vor.u32 %v1198, %v1194
        %v1200 = vrot.slane %v1199, 4
        %v1202 = vshll.u32 %v867, 16
        %v1204 = vrot.slane %v1202, 5
        %v1205 = vsel %vm254, %v1200, %v1204
        %v1207 = vshrl.u32 %v850, 16
        %v1209 = vrot.slane %v1207, 4
        %v1210 = vshll.u32 %v850, 16
        %v1212 = vrot.slane %v1210, 5
        %v1213 = vor.u32 %v1209, %v1212
        %v1214 = vrot.slane %v1213, 4
        %v1216 = vshll.u32 %v851, 16
        %v1218 = vrot.slane %v1216, 5
        %v1219 = vsel %vm254, %v1214, %v1218
        %v1220 = vshrl.u32 %v851, 16
        %v1222 = vrot.slane %v1220, 4
        %v1223 = vor.u32 %v1222, %v1218
        %v1224 = vrot.slane %v1223, 4
        %v1226 = vshll.u32 %v868, 16
        %v1228 = vrot.slane %v1226, 5
        %v1229 = vsel %vm254, %v1224, %v1228
        %v1231 = vshrl.u32 %v852, 16
        %v1233 = vrot.slane %v1231, 4
        %v1234 = vshll.u32 %v852, 16
        %v1236 = vrot.slane %v1234, 5
        %v1237 = vor.u32 %v1233, %v1236
        %v1238 = vrot.slane %v1237, 4
        %v1240 = vshll.u32 %v853, 16
        %v1242 = vrot.slane %v1240, 5
        %v1243 = vsel %vm254, %v1238, %v1242
        %v1244 = vshrl.u32 %v853, 16
        %v1246 = vrot.slane %v1244, 4
        %v1247 = vor.u32 %v1246, %v1242
        %v1248 = vrot.slane %v1247, 4
        %v1250 = vshll.u32 %v869, 16
        %v1252 = vrot.slane %v1250, 5
        %v1253 = vsel %vm254, %v1248, %v1252
        %v1254 = vld [vmem:[%s821] sm:$0xe]
        %v1255 = vld [vmem:[%s821 + $0xc] sm:$0xe]
        %v1256 = vld [vmem:[%s821 + $0x18] sm:$0xe]
        %v1257 = vld [vmem:[%s821 + $0x24] sm:$0xe]
        %v1258 = vld [vmem:[%s821 + $0x30] sm:$0xe]
        %v1259 = vld [vmem:[%s821 + $0x3c] sm:$0xe]
        %v1260 = vld [vmem:[%s821 + $0x48] sm:$0xe]
        %v1261 = vld [vmem:[%s821 + $0x54] sm:$0xe]
        %v1262 = vld [vmem:[%s821 + $0x60] sm:$0xe]
        %v1263 = vld [vmem:[%s821 + $0x6c] sm:$0xe]
        %v1264 = vld [vmem:[%s821 + $0x78] sm:$0xe]
        %v1265 = vld [vmem:[%s821 + $0x84] sm:$0xe]
        %v1266 = vld [vmem:[%s821 + $0x90] sm:$0xe]
        %v1267 = vld [vmem:[%s821 + $0x9c] sm:$0xe]
        %v1268 = vld [vmem:[%s821 + $0xa8] sm:$0xe]
        %v1269 = vld [vmem:[%s821 + $0xb4] sm:$0xe]
        %v1318 = vrot.slane %v1254, 5
        %v1319 = vrot.slane %v1318, 4
        %v1320 = vrot.slane %v823, 5
        %v1321 = vsel %vm705, %v1319, %v1320
        %v1322 = vrot.slane %v1320, 4
        %v1323 = vrot.slane %v854, 5
        %v1324 = vsel %vm705, %v1322, %v1323
        %v1325 = vrot.slane %v1255, 5
        %v1326 = vrot.slane %v1325, 4
        %v1327 = vrot.slane %v825, 5
        %v1328 = vsel %vm705, %v1326, %v1327
        %v1329 = vrot.slane %v1327, 4
        %v1330 = vrot.slane %v855, 5
        %v1331 = vsel %vm705, %v1329, %v1330
        %v1332 = vrot.slane %v1256, 5
        %v1333 = vrot.slane %v1332, 4
        %v1334 = vrot.slane %v827, 5
        %v1335 = vsel %vm705, %v1333, %v1334
        %v1336 = vrot.slane %v1334, 4
        %v1337 = vrot.slane %v856, 5
        %v1338 = vsel %vm705, %v1336, %v1337
        %v1339 = vrot.slane %v1257, 5
        %v1340 = vrot.slane %v1339, 4
        %v1341 = vrot.slane %v829, 5
        %v1342 = vsel %vm705, %v1340, %v1341
        %v1343 = vrot.slane %v1341, 4
        %v1344 = vrot.slane %v857, 5
        %v1345 = vsel %vm705, %v1343, %v1344
        %v1346 = vrot.slane %v1258, 5
        %v1347 = vrot.slane %v1346, 4
        %v1348 = vrot.slane %v831, 5
        %v1349 = vsel %vm705, %v1347, %v1348
        %v1350 = vrot.slane %v1348, 4
        %v1351 = vrot.slane %v858, 5
        %v1352 = vsel %vm705, %v1350, %v1351
        %v1353 = vrot.slane %v1259, 5
        %v1354 = vrot.slane %v1353, 4
        %v1355 = vrot.slane %v833, 5
        %v1356 = vsel %vm705, %v1354, %v1355
        %v1357 = vrot.slane %v1355, 4
        %v1358 = vrot.slane %v859, 5
        %v1359 = vsel %vm705, %v1357, %v1358
        %v1360 = vrot.slane %v1260, 5
        %v1361 = vrot.slane %v1360, 4
        %v1362 = vrot.slane %v835, 5
        %v1363 = vsel %vm705, %v1361, %v1362
        %v1364 = vrot.slane %v1362, 4
        %v1365 = vrot.slane %v860, 5
        %v1366 = vsel %vm705, %v1364, %v1365
        %v1367 = vrot.slane %v1261, 5
        %v1368 = vrot.slane %v1367, 4
        %v1369 = vrot.slane %v837, 5
        %v1370 = vsel %vm705, %v1368, %v1369
        %v1371 = vrot.slane %v1369, 4
        %v1372 = vrot.slane %v861, 5
        %v1373 = vsel %vm705, %v1371, %v1372
        %v1374 = vrot.slane %v1262, 5
        %v1375 = vrot.slane %v1374, 4
        %v1376 = vrot.slane %v839, 5
        %v1377 = vsel %vm705, %v1375, %v1376
        %v1378 = vrot.slane %v1376, 4
        %v1379 = vrot.slane %v862, 5
        %v1380 = vsel %vm705, %v1378, %v1379
        %v1381 = vrot.slane %v1263, 5
        %v1382 = vrot.slane %v1381, 4
        %v1383 = vrot.slane %v841, 5
        %v1384 = vsel %vm705, %v1382, %v1383
        %v1385 = vrot.slane %v1383, 4
        %v1386 = vrot.slane %v863, 5
        %v1387 = vsel %vm705, %v1385, %v1386
        %v1388 = vrot.slane %v1264, 5
        %v1389 = vrot.slane %v1388, 4
        %v1390 = vrot.slane %v843, 5
        %v1391 = vsel %vm705, %v1389, %v1390
        %v1392 = vrot.slane %v1390, 4
        %v1393 = vrot.slane %v864, 5
        %v1394 = vsel %vm705, %v1392, %v1393
        %v1395 = vrot.slane %v1265, 5
        %v1396 = vrot.slane %v1395, 4
        %v1397 = vrot.slane %v845, 5
        %v1398 = vsel %vm705, %v1396, %v1397
        %v1399 = vrot.slane %v1397, 4
        %v1400 = vrot.slane %v865, 5
        %v1401 = vsel %vm705, %v1399, %v1400
        %v1402 = vrot.slane %v1266, 5
        %v1403 = vrot.slane %v1402, 4
        %v1404 = vrot.slane %v847, 5
        %v1405 = vsel %vm705, %v1403, %v1404
        %v1406 = vrot.slane %v1404, 4
        %v1407 = vrot.slane %v866, 5
        %v1408 = vsel %vm705, %v1406, %v1407
        %v1409 = vrot.slane %v1267, 5
        %v1410 = vrot.slane %v1409, 4
        %v1411 = vrot.slane %v849, 5
        %v1412 = vsel %vm705, %v1410, %v1411
        %v1413 = vrot.slane %v1411, 4
        %v1414 = vrot.slane %v867, 5
        %v1415 = vsel %vm705, %v1413, %v1414
        %v1416 = vrot.slane %v1268, 5
        %v1417 = vrot.slane %v1416, 4
        %v1418 = vrot.slane %v851, 5
        %v1419 = vsel %vm705, %v1417, %v1418
        %v1420 = vrot.slane %v1418, 4
        %v1421 = vrot.slane %v868, 5
        %v1422 = vsel %vm705, %v1420, %v1421
        %v1423 = vrot.slane %v1269, 5
        %v1424 = vrot.slane %v1423, 4
        %v1425 = vrot.slane %v853, 5
        %v1426 = vsel %vm705, %v1424, %v1425
        %v1427 = vrot.slane %v1425, 4
        %v1428 = vrot.slane %v869, 5
        %v1429 = vsel %vm705, %v1427, %v1428
        %v1446 = vunpack.c.l.b16 %v204
        %v1447 = vunpack.c.l.b16 %v205
        %v1448 = vunpack.c.l.b16 %v206
        %v1449 = vunpack.c.l.b16 %v207
        %v1450 = vunpack.c.l.b16 %v208
        %v1451 = vunpack.c.l.b16 %v209
        %v1452 = vunpack.c.l.b16 %v210
        %v1453 = vunpack.c.l.b16 %v211
        %v1454 = vunpack.c.l.b16 %v212
        %v1455 = vunpack.c.l.b16 %v213
        %v1456 = vunpack.c.l.b16 %v214
        %v1457 = vunpack.c.l.b16 %v215
        %v1458 = vunpack.c.l.b16 %v216
        %v1459 = vunpack.c.l.b16 %v217
        %v1460 = vunpack.c.l.b16 %v218
        %v1461 = vunpack.c.l.b16 %v219
        %v1462 = vunpack.c.l.b16 %v220
        %v1463 = vunpack.c.l.b16 %v221
        %v1464 = vunpack.c.l.b16 %v222
        %v1465 = vunpack.c.l.b16 %v223
        %v1466 = vunpack.c.l.b16 %v224
        %v1467 = vunpack.c.l.b16 %v225
        %v1468 = vunpack.c.l.b16 %v226
        %v1469 = vunpack.c.l.b16 %v227
        %v1470 = vunpack.c.l.b16 %v228
        %v1471 = vunpack.c.l.b16 %v229
        %v1472 = vunpack.c.l.b16 %v230
        %v1473 = vunpack.c.l.b16 %v231
        %v1474 = vunpack.c.l.b16 %v232
        %v1475 = vunpack.c.l.b16 %v233
        %v1476 = vunpack.c.l.b16 %v234
        %v1477 = vunpack.c.l.b16 %v235
        %v1478 = vpack.c.b16 %v1447, %v1446
        %v1479 = vpack.c.b16 %v1449, %v1448
        %v1480 = vpack.c.b16 %v1451, %v1450
        %v1481 = vpack.c.b16 %v1453, %v1452
        %v1482 = vpack.c.b16 %v1455, %v1454
        %v1483 = vpack.c.b16 %v1457, %v1456
        %v1484 = vpack.c.b16 %v1459, %v1458
        %v1485 = vpack.c.b16 %v1461, %v1460
        %v1486 = vpack.c.b16 %v1463, %v1462
        %v1487 = vpack.c.b16 %v1465, %v1464
        %v1488 = vpack.c.b16 %v1467, %v1466
        %v1489 = vpack.c.b16 %v1469, %v1468
        %v1490 = vpack.c.b16 %v1471, %v1470
        %v1491 = vpack.c.b16 %v1473, %v1472
        %v1492 = vpack.c.b16 %v1475, %v1474
        %v1493 = vpack.c.b16 %v1477, %v1476
        %v1494 = vunpack.c.l.b16 %v268
        %v1495 = vunpack.c.l.b16 %v278
        %v1496 = vunpack.c.l.b16 %v292
        %v1497 = vunpack.c.l.b16 %v302
        %v1498 = vunpack.c.l.b16 %v316
        %v1499 = vunpack.c.l.b16 %v326
        %v1500 = vunpack.c.l.b16 %v340
        %v1501 = vunpack.c.l.b16 %v350
        %v1502 = vunpack.c.l.b16 %v364
        %v1503 = vunpack.c.l.b16 %v374
        %v1504 = vunpack.c.l.b16 %v388
        %v1505 = vunpack.c.l.b16 %v398
        %v1506 = vunpack.c.l.b16 %v412
        %v1507 = vunpack.c.l.b16 %v422
        %v1508 = vunpack.c.l.b16 %v436
        %v1509 = vunpack.c.l.b16 %v446
        %v1510 = vunpack.c.l.b16 %v460
        %v1511 = vunpack.c.l.b16 %v470
        %v1512 = vunpack.c.l.b16 %v484
        %v1513 = vunpack.c.l.b16 %v494
        %v1514 = vunpack.c.l.b16 %v508
        %v1515 = vunpack.c.l.b16 %v518
        %v1516 = vunpack.c.l.b16 %v532
        %v1517 = vunpack.c.l.b16 %v542
        %v1518 = vunpack.c.l.b16 %v556
        %v1519 = vunpack.c.l.b16 %v566
        %v1520 = vunpack.c.l.b16 %v580
        %v1521 = vunpack.c.l.b16 %v590
        %v1522 = vunpack.c.l.b16 %v604
        %v1523 = vunpack.c.l.b16 %v614
        %v1524 = vunpack.c.l.b16 %v628
        %v1525 = vunpack.c.l.b16 %v638
        %v1526 = vpack.c.b16 %v1495, %v1494
        %v1527 = vpack.c.b16 %v1497, %v1496
        %v1528 = vpack.c.b16 %v1499, %v1498
        %v1529 = vpack.c.b16 %v1501, %v1500
        %v1530 = vpack.c.b16 %v1503, %v1502
        %v1531 = vpack.c.b16 %v1505, %v1504
        %v1532 = vpack.c.b16 %v1507, %v1506
        %v1533 = vpack.c.b16 %v1509, %v1508
        %v1534 = vpack.c.b16 %v1511, %v1510
        %v1535 = vpack.c.b16 %v1513, %v1512
        %v1536 = vpack.c.b16 %v1515, %v1514
        %v1537 = vpack.c.b16 %v1517, %v1516
        %v1538 = vpack.c.b16 %v1519, %v1518
        %v1539 = vpack.c.b16 %v1521, %v1520
        %v1540 = vpack.c.b16 %v1523, %v1522
        %v1541 = vpack.c.b16 %v1525, %v1524
        %1542 = vrot.lane.b32.xlu0 %v1526, 4
        %v1543 = vpop.permute.xlu0 %1542
        %1544 = vrot.lane.b32.xlu0 %v1527, 4
        %v1545 = vpop.permute.xlu0 %1544
        %1546 = vrot.lane.b32.xlu0 %v1528, 4
        %v1547 = vpop.permute.xlu0 %1546
        %1548 = vrot.lane.b32.xlu0 %v1529, 4
        %v1549 = vpop.permute.xlu0 %1548
        %1550 = vrot.lane.b32.xlu0 %v1530, 4
        %v1551 = vpop.permute.xlu0 %1550
        %1552 = vrot.lane.b32.xlu0 %v1531, 4
        %v1553 = vpop.permute.xlu0 %1552
        %1554 = vrot.lane.b32.xlu0 %v1532, 4
        %v1555 = vpop.permute.xlu0 %1554
        %1556 = vrot.lane.b32.xlu0 %v1533, 4
        %v1557 = vpop.permute.xlu0 %1556
        %1558 = vrot.lane.b32.xlu0 %v1534, 4
        %v1559 = vpop.permute.xlu0 %1558
        %1560 = vrot.lane.b32.xlu0 %v1535, 4
        %v1561 = vpop.permute.xlu0 %1560
        %1562 = vrot.lane.b32.xlu0 %v1536, 4
        %v1563 = vpop.permute.xlu0 %1562
        %1564 = vrot.lane.b32.xlu0 %v1537, 4
        %v1565 = vpop.permute.xlu0 %1564
        %1566 = vrot.lane.b32.xlu0 %v1538, 4
        %v1567 = vpop.permute.xlu0 %1566
        %1568 = vrot.lane.b32.xlu0 %v1539, 4
        %v1569 = vpop.permute.xlu0 %1568
        %1570 = vrot.lane.b32.xlu0 %v1540, 4
        %v1571 = vpop.permute.xlu0 %1570
        %1572 = vrot.lane.b32.xlu0 %v1541, 4
        %v1573 = vpop.permute.xlu0 %1572
        %v1590 = vunpack.c.l.b16 %v822
        %v1591 = vunpack.c.l.b16 %v823
        %v1592 = vunpack.c.l.b16 %v824
        %v1593 = vunpack.c.l.b16 %v825
        %v1594 = vunpack.c.l.b16 %v826
        %v1595 = vunpack.c.l.b16 %v827
        %v1596 = vunpack.c.l.b16 %v828
        %v1597 = vunpack.c.l.b16 %v829
        %v1598 = vunpack.c.l.b16 %v830
        %v1599 = vunpack.c.l.b16 %v831
        %v1600 = vunpack.c.l.b16 %v832
        %v1601 = vunpack.c.l.b16 %v833
        %v1602 = vunpack.c.l.b16 %v834
        %v1603 = vunpack.c.l.b16 %v835
        %v1604 = vunpack.c.l.b16 %v836
        %v1605 = vunpack.c.l.b16 %v837
        %v1606 = vunpack.c.l.b16 %v838
        %v1607 = vunpack.c.l.b16 %v839
        %v1608 = vunpack.c.l.b16 %v840
        %v1609 = vunpack.c.l.b16 %v841
        %v1610 = vunpack.c.l.b16 %v842
        %v1611 = vunpack.c.l.b16 %v843
        %v1612 = vunpack.c.l.b16 %v844
        %v1613 = vunpack.c.l.b16 %v845
        %v1614 = vunpack.c.l.b16 %v846
        %v1615 = vunpack.c.l.b16 %v847
        %v1616 = vunpack.c.l.b16 %v848
        %v1617 = vunpack.c.l.b16 %v849
        %v1618 = vunpack.c.l.b16 %v850
        %v1619 = vunpack.c.l.b16 %v851
        %v1620 = vunpack.c.l.b16 %v852
        %v1621 = vunpack.c.l.b16 %v853
        %v1622 = vpack.c.b16 %v1591, %v1590
        %v1623 = vpack.c.b16 %v1593, %v1592
        %v1624 = vpack.c.b16 %v1595, %v1594
        %v1625 = vpack.c.b16 %v1597, %v1596
        %v1626 = vpack.c.b16 %v1599, %v1598
        %v1627 = vpack.c.b16 %v1601, %v1600
        %v1628 = vpack.c.b16 %v1603, %v1602
        %v1629 = vpack.c.b16 %v1605, %v1604
        %v1630 = vpack.c.b16 %v1607, %v1606
        %v1631 = vpack.c.b16 %v1609, %v1608
        %v1632 = vpack.c.b16 %v1611, %v1610
        %v1633 = vpack.c.b16 %v1613, %v1612
        %v1634 = vpack.c.b16 %v1615, %v1614
        %v1635 = vpack.c.b16 %v1617, %v1616
        %v1636 = vpack.c.b16 %v1619, %v1618
        %v1637 = vpack.c.b16 %v1621, %v1620
        %1638 = vrot.lane.b32.xlu0 %v1622, 8
        %v1639 = vpop.permute.xlu0 %1638
        %1640 = vrot.lane.b32.xlu0 %v1623, 8
        %v1641 = vpop.permute.xlu0 %1640
        %1642 = vrot.lane.b32.xlu0 %v1624, 8
        %v1643 = vpop.permute.xlu0 %1642
        %1644 = vrot.lane.b32.xlu0 %v1625, 8
        %v1645 = vpop.permute.xlu0 %1644
        %1646 = vrot.lane.b32.xlu0 %v1626, 8
        %v1647 = vpop.permute.xlu0 %1646
        %1648 = vrot.lane.b32.xlu0 %v1627, 8
        %v1649 = vpop.permute.xlu0 %1648
        %1650 = vrot.lane.b32.xlu0 %v1628, 8
        %v1651 = vpop.permute.xlu0 %1650
        %1652 = vrot.lane.b32.xlu0 %v1629, 8
        %v1653 = vpop.permute.xlu0 %1652
        %1654 = vrot.lane.b32.xlu0 %v1630, 8
        %v1655 = vpop.permute.xlu0 %1654
        %1656 = vrot.lane.b32.xlu0 %v1631, 8
        %v1657 = vpop.permute.xlu0 %1656
        %1658 = vrot.lane.b32.xlu0 %v1632, 8
        %v1659 = vpop.permute.xlu0 %1658
        %1660 = vrot.lane.b32.xlu0 %v1633, 8
        %v1661 = vpop.permute.xlu0 %1660
        %1662 = vrot.lane.b32.xlu0 %v1634, 8
        %v1663 = vpop.permute.xlu0 %1662
        %1664 = vrot.lane.b32.xlu0 %v1635, 8
        %v1665 = vpop.permute.xlu0 %1664
        %1666 = vrot.lane.b32.xlu0 %v1636, 8
        %v1667 = vpop.permute.xlu0 %1666
        %1668 = vrot.lane.b32.xlu0 %v1637, 8
        %v1669 = vpop.permute.xlu0 %1668
        %v1670 = vunpack.c.l.b16 %v883
        %v1671 = vunpack.c.l.b16 %v893
        %v1672 = vunpack.c.l.b16 %v907
        %v1673 = vunpack.c.l.b16 %v917
        %v1674 = vunpack.c.l.b16 %v931
        %v1675 = vunpack.c.l.b16 %v941
        %v1676 = vunpack.c.l.b16 %v955
        %v1677 = vunpack.c.l.b16 %v965
        %v1678 = vunpack.c.l.b16 %v979
        %v1679 = vunpack.c.l.b16 %v989
        %v1680 = vunpack.c.l.b16 %v1003
        %v1681 = vunpack.c.l.b16 %v1013
        %v1682 = vunpack.c.l.b16 %v1027
        %v1683 = vunpack.c.l.b16 %v1037
        %v1684 = vunpack.c.l.b16 %v1051
        %v1685 = vunpack.c.l.b16 %v1061
        %v1686 = vunpack.c.l.b16 %v1075
        %v1687 = vunpack.c.l.b16 %v1085
        %v1688 = vunpack.c.l.b16 %v1099
        %v1689 = vunpack.c.l.b16 %v1109
        %v1690 = vunpack.c.l.b16 %v1123
        %v1691 = vunpack.c.l.b16 %v1133
        %v1692 = vunpack.c.l.b16 %v1147
        %v1693 = vunpack.c.l.b16 %v1157
        %v1694 = vunpack.c.l.b16 %v1171
        %v1695 = vunpack.c.l.b16 %v1181
        %v1696 = vunpack.c.l.b16 %v1195
        %v1697 = vunpack.c.l.b16 %v1205
        %v1698 = vunpack.c.l.b16 %v1219
        %v1699 = vunpack.c.l.b16 %v1229
        %v1700 = vunpack.c.l.b16 %v1243
        %v1701 = vunpack.c.l.b16 %v1253
        %v1702 = vpack.c.b16 %v1671, %v1670
        %v1703 = vpack.c.b16 %v1673, %v1672
        %v1704 = vpack.c.b16 %v1675, %v1674
        %v1705 = vpack.c.b16 %v1677, %v1676
        %v1706 = vpack.c.b16 %v1679, %v1678
        %v1707 = vpack.c.b16 %v1681, %v1680
        %v1708 = vpack.c.b16 %v1683, %v1682
        %v1709 = vpack.c.b16 %v1685, %v1684
        %v1710 = vpack.c.b16 %v1687, %v1686
        %v1711 = vpack.c.b16 %v1689, %v1688
        %v1712 = vpack.c.b16 %v1691, %v1690
        %v1713 = vpack.c.b16 %v1693, %v1692
        %v1714 = vpack.c.b16 %v1695, %v1694
        %v1715 = vpack.c.b16 %v1697, %v1696
        %v1716 = vpack.c.b16 %v1699, %v1698
        %v1717 = vpack.c.b16 %v1701, %v1700
        %1718 = vrot.lane.b32.xlu0 %v1702, 12
        %v1719 = vpop.permute.xlu0 %1718
        %1720 = vrot.lane.b32.xlu0 %v1703, 12
        %v1721 = vpop.permute.xlu0 %1720
        %1722 = vrot.lane.b32.xlu0 %v1704, 12
        %v1723 = vpop.permute.xlu0 %1722
        %1724 = vrot.lane.b32.xlu0 %v1705, 12
        %v1725 = vpop.permute.xlu0 %1724
        %1726 = vrot.lane.b32.xlu0 %v1706, 12
        %v1727 = vpop.permute.xlu0 %1726
        %1728 = vrot.lane.b32.xlu0 %v1707, 12
        %v1729 = vpop.permute.xlu0 %1728
        %1730 = vrot.lane.b32.xlu0 %v1708, 12
        %v1731 = vpop.permute.xlu0 %1730
        %1732 = vrot.lane.b32.xlu0 %v1709, 12
        %v1733 = vpop.permute.xlu0 %1732
        %1734 = vrot.lane.b32.xlu0 %v1710, 12
        %v1735 = vpop.permute.xlu0 %1734
        %1736 = vrot.lane.b32.xlu0 %v1711, 12
        %v1737 = vpop.permute.xlu0 %1736
        %1738 = vrot.lane.b32.xlu0 %v1712, 12
        %v1739 = vpop.permute.xlu0 %1738
        %1740 = vrot.lane.b32.xlu0 %v1713, 12
        %v1741 = vpop.permute.xlu0 %1740
        %1742 = vrot.lane.b32.xlu0 %v1714, 12
        %v1743 = vpop.permute.xlu0 %1742
        %1744 = vrot.lane.b32.xlu0 %v1715, 12
        %v1745 = vpop.permute.xlu0 %1744
        %1746 = vrot.lane.b32.xlu0 %v1716, 12
        %v1747 = vpop.permute.xlu0 %1746
        %1748 = vrot.lane.b32.xlu0 %v1717, 12
        %v1749 = vpop.permute.xlu0 %1748
        %vm1750 = vcmask 31744
        %v1753 = vsel %vm1750, %v1478, %v1543
        %v1756 = vsel %vm1750, %v1479, %v1545
        %v1759 = vsel %vm1750, %v1480, %v1547
        %v1762 = vsel %vm1750, %v1481, %v1549
        %v1765 = vsel %vm1750, %v1482, %v1551
        %v1768 = vsel %vm1750, %v1483, %v1553
        %v1771 = vsel %vm1750, %v1484, %v1555
        %v1774 = vsel %vm1750, %v1485, %v1557
        %v1777 = vsel %vm1750, %v1486, %v1559
        %v1780 = vsel %vm1750, %v1487, %v1561
        %v1783 = vsel %vm1750, %v1488, %v1563
        %v1786 = vsel %vm1750, %v1489, %v1565
        %v1789 = vsel %vm1750, %v1490, %v1567
        %v1792 = vsel %vm1750, %v1491, %v1569
        %v1795 = vsel %vm1750, %v1492, %v1571
        %v1798 = vsel %vm1750, %v1493, %v1573
        %vm1799 = vcmask 64512
        %v1801 = vsel %vm1799, %v1753, %v1639
        %v1803 = vsel %vm1799, %v1756, %v1641
        %v1805 = vsel %vm1799, %v1759, %v1643
        %v1807 = vsel %vm1799, %v1762, %v1645
        %v1809 = vsel %vm1799, %v1765, %v1647
        %v1811 = vsel %vm1799, %v1768, %v1649
        %v1813 = vsel %vm1799, %v1771, %v1651
        %v1815 = vsel %vm1799, %v1774, %v1653
        %v1817 = vsel %vm1799, %v1777, %v1655
        %v1819 = vsel %vm1799, %v1780, %v1657
        %v1821 = vsel %vm1799, %v1783, %v1659
        %v1823 = vsel %vm1799, %v1786, %v1661
        %v1825 = vsel %vm1799, %v1789, %v1663
        %v1827 = vsel %vm1799, %v1792, %v1665
        %v1829 = vsel %vm1799, %v1795, %v1667
        %v1831 = vsel %vm1799, %v1798, %v1669
        %vm1832 = vcmask 97280
        %v1834 = vsel %vm1832, %v1801, %v1719
        %v1836 = vsel %vm1832, %v1803, %v1721
        %v1838 = vsel %vm1832, %v1805, %v1723
        %v1840 = vsel %vm1832, %v1807, %v1725
        %v1842 = vsel %vm1832, %v1809, %v1727
        %v1844 = vsel %vm1832, %v1811, %v1729
        %v1846 = vsel %vm1832, %v1813, %v1731
        %v1848 = vsel %vm1832, %v1815, %v1733
        %v1850 = vsel %vm1832, %v1817, %v1735
        %v1852 = vsel %vm1832, %v1819, %v1737
        %v1854 = vsel %vm1832, %v1821, %v1739
        %v1856 = vsel %vm1832, %v1823, %v1741
        %v1858 = vsel %vm1832, %v1825, %v1743
        %v1860 = vsel %vm1832, %v1827, %v1745
        %v1862 = vsel %vm1832, %v1829, %v1747
        %v1864 = vsel %vm1832, %v1831, %v1749
        %s1865 = smul.u32 %s20, 4
        %s1866 = smul.addr %s1865, 4
        %s1867 = scalar_lea.vmem %s1, %s1866
        %v1868 = vld [vmem:[%s1867] sm:$0xf]
        %v1869 = vld [vmem:[%s1867 + $0x4] sm:$0xf]
        %v1872 = vunpack.c.l.b16 %v1868
        %v1873 = vunpack.c.l.b16 %v1869
        %v1874 = vpack.c.b16 %v1873, %v1872
        %vm1876 = vcmask 130048
        %v1877 = vsel %vm1876, %v1834, 0
        %v1879 = vsel %vm1876, %v1836, 0
        %v1881 = vsel %vm1876, %v1838, 0
        %v1883 = vsel %vm1876, %v1840, 0
        %v1885 = vsel %vm1876, %v1842, 0
        %v1887 = vsel %vm1876, %v1844, 0
        %v1889 = vsel %vm1876, %v1846, 0
        %v1891 = vsel %vm1876, %v1848, 0
        %v1893 = vsel %vm1876, %v1850, 0
        %v1895 = vsel %vm1876, %v1852, 0
        %v1897 = vsel %vm1876, %v1854, 0
        %v1899 = vsel %vm1876, %v1856, 0
        %v1901 = vsel %vm1876, %v1858, 0
        %v1903 = vsel %vm1876, %v1860, 0
        %v1905 = vsel %vm1876, %v1862, 0
        %v1907 = vsel %vm1876, %v1864, 0
        %1909 = vmatprep.subr.bf16.mxu0 0
        %1910 = vmatpush1.bf16.msra.mxu0 %v1874
        %1911 = vmatprep.subr.bf16.mxu0 0
        %1912 = vmatpush1.bf16.msra.mxu0 0
        %1913 = vmatprep.subr.bf16.mxu0 0
        %1914 = vmatpush1.bf16.msra.mxu0 0
        %1915 = vmatprep.subr.bf16.mxu0 0
        %1916 = vmatpush1.bf16.msra.mxu0 0
        %1917 = vmatprep.subr.bf16.mxu0 0
        %1918 = vmatpush1.bf16.msra.mxu0 0
        %1919 = vmatprep.subr.bf16.mxu0 0
        %1920 = vmatpush1.bf16.msra.mxu0 0
        %1921 = vmatprep.subr.bf16.mxu0 0
        %1922 = vmatpush1.bf16.msra.mxu0 0
        %1923 = vmatprep.subr.bf16.mxu0 0
        %1924 = vmatpush1.bf16.msra.mxu0 0
        %1925 = vmatprep.subr.bf16.mxu0 0
        %1926 = vmatpush1.bf16.msra.mxu0 0
        %1927 = vmatprep.subr.bf16.mxu0 0
        %1928 = vmatpush1.bf16.msra.mxu0 0
        %1929 = vmatprep.subr.bf16.mxu0 0
        %1930 = vmatpush1.bf16.msra.mxu0 0
        %1931 = vmatprep.subr.bf16.mxu0 0
        %1932 = vmatpush1.bf16.msra.mxu0 0
        %1933 = vmatprep.subr.bf16.mxu0 0
        %1934 = vmatpush1.bf16.msra.mxu0 0
        %1935 = vmatprep.subr.bf16.mxu0 0
        %1936 = vmatpush1.bf16.msra.mxu0 0
        %1937 = vmatprep.subr.bf16.mxu0 0
        %1938 = vmatpush1.bf16.msra.mxu0 0
        %1939 = vmatprep.subr.bf16.mxu0 0
        %1940 = vmatpush1.bf16.msra.mxu0 0
        %1941 = vmatprep.mubr.bf16.mxu0 0
        %1942 = vmatmul.mubr.bf16.gmra.mrb[0].mxu0 %v1877
        %v1943 = vpop.f32.mrb[0].mxu0
        %v1944 = vadd.f32 0.0, %v1943
        %v1945 = vpop.f32.mrb[0].mxu0
        %v1946 = vpop.f32.mrb[0].mxu0
        %v1947 = vadd.f32 0.0, %v1946
        %v1948 = vpop.f32.mrb[0].mxu0
        %1949 = vmatprep.mubr.bf16.mxu0 0
        %1950 = vmatmul.mubr.bf16.gmra.mrb[0].mxu0 %v1879
        %v1951 = vpop.f32.mrb[0].mxu0
        %v1952 = vadd.f32 0.0, %v1951
        %v1953 = vpop.f32.mrb[0].mxu0
        %v1954 = vpop.f32.mrb[0].mxu0
        %v1955 = vadd.f32 0.0, %v1954
        %v1956 = vpop.f32.mrb[0].mxu0
        %1957 = vmatprep.mubr.bf16.mxu0 0
        %1958 = vmatmul.mubr.bf16.gmra.mrb[0].mxu0 %v1881
        %v1959 = vpop.f32.mrb[0].mxu0
        %v1960 = vadd.f32 0.0, %v1959
        %v1961 = vpop.f32.mrb[0].mxu0
        %v1962 = vpop.f32.mrb[0].mxu0
        %v1963 = vadd.f32 0.0, %v1962
        %v1964 = vpop.f32.mrb[0].mxu0
        %1965 = vmatprep.mubr.bf16.mxu0 0
        %1966 = vmatmul.mubr.bf16.gmra.mrb[0].mxu0 %v1883
        %v1967 = vpop.f32.mrb[0].mxu0
        %v1968 = vadd.f32 0.0, %v1967
        %v1969 = vpop.f32.mrb[0].mxu0
        %v1970 = vpop.f32.mrb[0].mxu0
        %v1971 = vadd.f32 0.0, %v1970
        %v1972 = vpop.f32.mrb[0].mxu0
        %1973 = vmatprep.mubr.bf16.mxu0 0
        %1974 = vmatmul.mubr.bf16.gmra.mrb[0].mxu0 %v1885
        %v1975 = vpop.f32.mrb[0].mxu0
        %v1976 = vadd.f32 0.0, %v1975
        %v1977 = vpop.f32.mrb[0].mxu0
        %v1978 = vpop.f32.mrb[0].mxu0
        %v1979 = vadd.f32 0.0, %v1978
        %v1980 = vpop.f32.mrb[0].mxu0
        %1981 = vmatprep.mubr.bf16.mxu0 0
        %1982 = vmatmul.mubr.bf16.gmra.mrb[0].mxu0 %v1887
        %v1983 = vpop.f32.mrb[0].mxu0
        %v1984 = vadd.f32 0.0, %v1983
        %v1985 = vpop.f32.mrb[0].mxu0
        %v1986 = vpop.f32.mrb[0].mxu0
        %v1987 = vadd.f32 0.0, %v1986
        %v1988 = vpop.f32.mrb[0].mxu0
        %1989 = vmatprep.mubr.bf16.mxu0 0
        %1990 = vmatmul.mubr.bf16.gmra.mrb[0].mxu0 %v1889
        %v1991 = vpop.f32.mrb[0].mxu0
        %v1992 = vadd.f32 0.0, %v1991
        %v1993 = vpop.f32.mrb[0].mxu0
        %v1994 = vpop.f32.mrb[0].mxu0
        %v1995 = vadd.f32 0.0, %v1994
        %v1996 = vpop.f32.mrb[0].mxu0
        %1997 = vmatprep.mubr.bf16.mxu0 0
        %1998 = vmatmul.mubr.bf16.gmra.mrb[0].mxu0 %v1891
        %v1999 = vpop.f32.mrb[0].mxu0
        %v2000 = vadd.f32 0.0, %v1999
        %v2001 = vpop.f32.mrb[0].mxu0
        %v2002 = vpop.f32.mrb[0].mxu0
        %v2003 = vadd.f32 0.0, %v2002
        %v2004 = vpop.f32.mrb[0].mxu0
        %2005 = vmatprep.mubr.bf16.mxu0 0
        %2006 = vmatmul.mubr.bf16.gmra.mrb[0].mxu0 %v1893
        %v2007 = vpop.f32.mrb[0].mxu0
        %v2008 = vadd.f32 0.0, %v2007
        %v2009 = vpop.f32.mrb[0].mxu0
        %v2010 = vpop.f32.mrb[0].mxu0
        %v2011 = vadd.f32 0.0, %v2010
        %v2012 = vpop.f32.mrb[0].mxu0
        %2013 = vmatprep.mubr.bf16.mxu0 0
        %2014 = vmatmul.mubr.bf16.gmra.mrb[0].mxu0 %v1895
        %v2015 = vpop.f32.mrb[0].mxu0
        %v2016 = vadd.f32 0.0, %v2015
        %v2017 = vpop.f32.mrb[0].mxu0
        %v2018 = vpop.f32.mrb[0].mxu0
        %v2019 = vadd.f32 0.0, %v2018
        %v2020 = vpop.f32.mrb[0].mxu0
        %2021 = vmatprep.mubr.bf16.mxu0 0
        %2022 = vmatmul.mubr.bf16.gmra.mrb[0].mxu0 %v1897
        %v2023 = vpop.f32.mrb[0].mxu0
        %v2024 = vadd.f32 0.0, %v2023
        %v2025 = vpop.f32.mrb[0].mxu0
        %v2026 = vpop.f32.mrb[0].mxu0
        %v2027 = vadd.f32 0.0, %v2026
        %v2028 = vpop.f32.mrb[0].mxu0
        %2029 = vmatprep.mubr.bf16.mxu0 0
        %2030 = vmatmul.mubr.bf16.gmra.mrb[0].mxu0 %v1899
        %v2031 = vpop.f32.mrb[0].mxu0
        %v2032 = vadd.f32 0.0, %v2031
        %v2033 = vpop.f32.mrb[0].mxu0
        %v2034 = vpop.f32.mrb[0].mxu0
        %v2035 = vadd.f32 0.0, %v2034
        %v2036 = vpop.f32.mrb[0].mxu0
        %2037 = vmatprep.mubr.bf16.mxu0 0
        %2038 = vmatmul.mubr.bf16.gmra.mrb[0].mxu0 %v1901
        %v2039 = vpop.f32.mrb[0].mxu0
        %v2040 = vadd.f32 0.0, %v2039
        %v2041 = vpop.f32.mrb[0].mxu0
        %v2042 = vpop.f32.mrb[0].mxu0
        %v2043 = vadd.f32 0.0, %v2042
        %v2044 = vpop.f32.mrb[0].mxu0
        %2045 = vmatprep.mubr.bf16.mxu0 0
        %2046 = vmatmul.mubr.bf16.gmra.mrb[0].mxu0 %v1903
        %v2047 = vpop.f32.mrb[0].mxu0
        %v2048 = vadd.f32 0.0, %v2047
        %v2049 = vpop.f32.mrb[0].mxu0
        %v2050 = vpop.f32.mrb[0].mxu0
        %v2051 = vadd.f32 0.0, %v2050
        %v2052 = vpop.f32.mrb[0].mxu0
        %2053 = vmatprep.mubr.bf16.mxu0 0
        %2054 = vmatmul.mubr.bf16.gmra.mrb[0].mxu0 %v1905
        %v2055 = vpop.f32.mrb[0].mxu0
        %v2056 = vadd.f32 0.0, %v2055
        %v2057 = vpop.f32.mrb[0].mxu0
        %v2058 = vpop.f32.mrb[0].mxu0
        %v2059 = vadd.f32 0.0, %v2058
        %v2060 = vpop.f32.mrb[0].mxu0
        %2061 = vmatprep.mubr.bf16.mxu0 0
        %2062 = vmatmul.mubr.bf16.gmra.mrb[0].mxu0 %v1907
        %v2063 = vpop.f32.mrb[0].mxu0
        %v2064 = vadd.f32 0.0, %v2063
        %v2065 = vpop.f32.mrb[0].mxu0
        %v2066 = vpop.f32.mrb[0].mxu0
        %v2067 = vadd.f32 0.0, %v2066
        %v2068 = vpop.f32.mrb[0].mxu0
        %2069 = vdwg.mxu0
        %v2070 = vmax.f32 %v1944, 0.0
        %v2071 = vmax.f32 %v1947, 0.0
        %v2072 = vmax.f32 %v1952, 0.0
        %v2073 = vmax.f32 %v1955, 0.0
        %v2074 = vmax.f32 %v1960, 0.0
        %v2075 = vmax.f32 %v1963, 0.0
        %v2076 = vmax.f32 %v1968, 0.0
        %v2077 = vmax.f32 %v1971, 0.0
        %v2078 = vmax.f32 %v1976, 0.0
        %v2079 = vmax.f32 %v1979, 0.0
        %v2080 = vmax.f32 %v1984, 0.0
        %v2081 = vmax.f32 %v1987, 0.0
        %v2082 = vmax.f32 %v1992, 0.0
        %v2083 = vmax.f32 %v1995, 0.0
        %v2084 = vmax.f32 %v2000, 0.0
        %v2085 = vmax.f32 %v2003, 0.0
        %v2086 = vmax.f32 %v2008, 0.0
        %v2087 = vmax.f32 %v2011, 0.0
        %v2088 = vmax.f32 %v2016, 0.0
        %v2089 = vmax.f32 %v2019, 0.0
        %v2090 = vmax.f32 %v2024, 0.0
        %v2091 = vmax.f32 %v2027, 0.0
        %v2092 = vmax.f32 %v2032, 0.0
        %v2093 = vmax.f32 %v2035, 0.0
        %v2094 = vmax.f32 %v2040, 0.0
        %v2095 = vmax.f32 %v2043, 0.0
        %v2096 = vmax.f32 %v2048, 0.0
        %v2097 = vmax.f32 %v2051, 0.0
        %v2098 = vmax.f32 %v2056, 0.0
        %v2099 = vmax.f32 %v2059, 0.0
        %v2100 = vmax.f32 %v2064, 0.0
        %v2101 = vmax.f32 %v2067, 0.0
        %v2102 = vadd.f32 %v2070, %v2071
        %v2103 = vadd.f32 %v2102, %v2072
        %v2104 = vadd.f32 %v2103, %v2073
        %v2105 = vadd.f32 %v2104, %v2074
        %v2106 = vadd.f32 %v2105, %v2075
        %v2107 = vadd.f32 %v2106, %v2076
        %v2108 = vadd.f32 %v2107, %v2077
        %v2109 = vadd.f32 %v2108, %v2078
        %v2110 = vadd.f32 %v2109, %v2079
        %v2111 = vadd.f32 %v2110, %v2080
        %v2112 = vadd.f32 %v2111, %v2081
        %v2113 = vadd.f32 %v2112, %v2082
        %v2114 = vadd.f32 %v2113, %v2083
        %v2115 = vadd.f32 %v2114, %v2084
        %v2116 = vadd.f32 %v2115, %v2085
        %v2117 = vadd.f32 %v2116, %v2086
        %v2118 = vadd.f32 %v2117, %v2087
        %v2119 = vadd.f32 %v2118, %v2088
        %v2120 = vadd.f32 %v2119, %v2089
        %v2121 = vadd.f32 %v2120, %v2090
        %v2122 = vadd.f32 %v2121, %v2091
        %v2123 = vadd.f32 %v2122, %v2092
        %v2124 = vadd.f32 %v2123, %v2093
        %v2125 = vadd.f32 %v2124, %v2094
        %v2126 = vadd.f32 %v2125, %v2095
        %v2127 = vadd.f32 %v2126, %v2096
        %v2128 = vadd.f32 %v2127, %v2097
        %v2129 = vadd.f32 %v2128, %v2098
        %v2130 = vadd.f32 %v2129, %v2099
        %v2131 = vadd.f32 %v2130, %v2100
        %v2132 = vadd.f32 %v2131, %v2101
        %v2133 = vrot.slane %v2132, 4
        %v2134 = vadd.f32 %v2132, %v2133
        %v2135 = vrot.slane %v2134, 2
        %v2136 = vadd.f32 %v2134, %v2135
        %v2137 = vrot.slane %v2136, 1
        %v2138 = vadd.f32 %v2136, %v2137
        %v2139 = vadd.f32 %v2138, 0.0
        %v2140 = vmul.f32 %v2070, %v2070
        %v2141 = vmul.f32 %v2071, %v2071
        %v2142 = vmul.f32 %v2072, %v2072
        %v2143 = vmul.f32 %v2073, %v2073
        %v2144 = vmul.f32 %v2074, %v2074
        %v2145 = vmul.f32 %v2075, %v2075
        %v2146 = vmul.f32 %v2076, %v2076
        %v2147 = vmul.f32 %v2077, %v2077
        %v2148 = vmul.f32 %v2078, %v2078
        %v2149 = vmul.f32 %v2079, %v2079
        %v2150 = vmul.f32 %v2080, %v2080
        %v2151 = vmul.f32 %v2081, %v2081
        %v2152 = vmul.f32 %v2082, %v2082
        %v2153 = vmul.f32 %v2083, %v2083
        %v2154 = vmul.f32 %v2084, %v2084
        %v2155 = vmul.f32 %v2085, %v2085
        %v2156 = vmul.f32 %v2086, %v2086
        %v2157 = vmul.f32 %v2087, %v2087
        %v2158 = vmul.f32 %v2088, %v2088
        %v2159 = vmul.f32 %v2089, %v2089
        %v2160 = vmul.f32 %v2090, %v2090
        %v2161 = vmul.f32 %v2091, %v2091
        %v2162 = vmul.f32 %v2092, %v2092
        %v2163 = vmul.f32 %v2093, %v2093
        %v2164 = vmul.f32 %v2094, %v2094
        %v2165 = vmul.f32 %v2095, %v2095
        %v2166 = vmul.f32 %v2096, %v2096
        %v2167 = vmul.f32 %v2097, %v2097
        %v2168 = vmul.f32 %v2098, %v2098
        %v2169 = vmul.f32 %v2099, %v2099
        %v2170 = vmul.f32 %v2100, %v2100
        %v2171 = vmul.f32 %v2101, %v2101
        %v2172 = vadd.f32 %v2140, %v2141
        %v2173 = vadd.f32 %v2172, %v2142
        %v2174 = vadd.f32 %v2173, %v2143
        %v2175 = vadd.f32 %v2174, %v2144
        %v2176 = vadd.f32 %v2175, %v2145
        %v2177 = vadd.f32 %v2176, %v2146
        %v2178 = vadd.f32 %v2177, %v2147
        %v2179 = vadd.f32 %v2178, %v2148
        %v2180 = vadd.f32 %v2179, %v2149
        %v2181 = vadd.f32 %v2180, %v2150
        %v2182 = vadd.f32 %v2181, %v2151
        %v2183 = vadd.f32 %v2182, %v2152
        %v2184 = vadd.f32 %v2183, %v2153
        %v2185 = vadd.f32 %v2184, %v2154
        %v2186 = vadd.f32 %v2185, %v2155
        %v2187 = vadd.f32 %v2186, %v2156
        %v2188 = vadd.f32 %v2187, %v2157
        %v2189 = vadd.f32 %v2188, %v2158
        %v2190 = vadd.f32 %v2189, %v2159
        %v2191 = vadd.f32 %v2190, %v2160
        %v2192 = vadd.f32 %v2191, %v2161
        %v2193 = vadd.f32 %v2192, %v2162
        %v2194 = vadd.f32 %v2193, %v2163
        %v2195 = vadd.f32 %v2194, %v2164
        %v2196 = vadd.f32 %v2195, %v2165
        %v2197 = vadd.f32 %v2196, %v2166
        %v2198 = vadd.f32 %v2197, %v2167
        %v2199 = vadd.f32 %v2198, %v2168
        %v2200 = vadd.f32 %v2199, %v2169
        %v2201 = vadd.f32 %v2200, %v2170
        %v2202 = vadd.f32 %v2201, %v2171
        %v2203 = vrot.slane %v2202, 4
        %v2204 = vadd.f32 %v2202, %v2203
        %v2205 = vrot.slane %v2204, 2
        %v2206 = vadd.f32 %v2204, %v2205
        %v2207 = vrot.slane %v2206, 1
        %v2208 = vadd.f32 %v2206, %v2207
        %v2209 = vadd.f32 %v2208, 0.0
        %v2210 = vpack.c.bf16 %v2071, %v2070
        %v2211 = vpack.c.bf16 %v2073, %v2072
        %v2212 = vpack.c.bf16 %v2075, %v2074
        %v2213 = vpack.c.bf16 %v2077, %v2076
        %v2214 = vpack.c.bf16 %v2079, %v2078
        %v2215 = vpack.c.bf16 %v2081, %v2080
        %v2216 = vpack.c.bf16 %v2083, %v2082
        %v2217 = vpack.c.bf16 %v2085, %v2084
        %v2218 = vpack.c.bf16 %v2087, %v2086
        %v2219 = vpack.c.bf16 %v2089, %v2088
        %v2220 = vpack.c.bf16 %v2091, %v2090
        %v2221 = vpack.c.bf16 %v2093, %v2092
        %v2222 = vpack.c.bf16 %v2095, %v2094
        %v2223 = vpack.c.bf16 %v2097, %v2096
        %v2224 = vpack.c.bf16 %v2099, %v2098
        %v2225 = vpack.c.bf16 %v2101, %v2100
        %v2242 = vunpack.c.l.b16 %v2210
        %v2243 = vunpack.c.h.b16 %v2210
        %v2244 = vunpack.c.l.b16 %v2211
        %v2245 = vunpack.c.h.b16 %v2211
        %v2246 = vunpack.c.l.b16 %v2212
        %v2247 = vunpack.c.h.b16 %v2212
        %v2248 = vunpack.c.l.b16 %v2213
        %v2249 = vunpack.c.h.b16 %v2213
        %v2250 = vunpack.c.l.b16 %v2214
        %v2251 = vunpack.c.h.b16 %v2214
        %v2252 = vunpack.c.l.b16 %v2215
        %v2253 = vunpack.c.h.b16 %v2215
        %v2254 = vunpack.c.l.b16 %v2216
        %v2255 = vunpack.c.h.b16 %v2216
        %v2256 = vunpack.c.l.b16 %v2217
        %v2257 = vunpack.c.h.b16 %v2217
        %v2258 = vunpack.c.l.b16 %v2218
        %v2259 = vunpack.c.h.b16 %v2218
        %v2260 = vunpack.c.l.b16 %v2219
        %v2261 = vunpack.c.h.b16 %v2219
        %v2262 = vunpack.c.l.b16 %v2220
        %v2263 = vunpack.c.h.b16 %v2220
        %v2264 = vunpack.c.l.b16 %v2221
        %v2265 = vunpack.c.h.b16 %v2221
        %v2266 = vunpack.c.l.b16 %v2222
        %v2267 = vunpack.c.h.b16 %v2222
        %v2268 = vunpack.c.l.b16 %v2223
        %v2269 = vunpack.c.h.b16 %v2223
        %v2270 = vunpack.c.l.b16 %v2224
        %v2271 = vunpack.c.h.b16 %v2224
        %v2272 = vunpack.c.l.b16 %v2225
        %v2273 = vunpack.c.h.b16 %v2225
        %v2274 = vpack.c.b16 %v2242, %v2242
        %v2275 = vpack.c.b16 %v2243, %v2243
        %v2276 = vpack.c.b16 %v2244, %v2244
        %v2277 = vpack.c.b16 %v2245, %v2245
        %v2278 = vpack.c.b16 %v2246, %v2246
        %v2279 = vpack.c.b16 %v2247, %v2247
        %v2280 = vpack.c.b16 %v2248, %v2248
        %v2281 = vpack.c.b16 %v2249, %v2249
        %v2282 = vpack.c.b16 %v2250, %v2250
        %v2283 = vpack.c.b16 %v2251, %v2251
        %v2284 = vpack.c.b16 %v2252, %v2252
        %v2285 = vpack.c.b16 %v2253, %v2253
        %v2286 = vpack.c.b16 %v2254, %v2254
        %v2287 = vpack.c.b16 %v2255, %v2255
        %v2288 = vpack.c.b16 %v2256, %v2256
        %v2289 = vpack.c.b16 %v2257, %v2257
        %v2290 = vpack.c.b16 %v2258, %v2258
        %v2291 = vpack.c.b16 %v2259, %v2259
        %v2292 = vpack.c.b16 %v2260, %v2260
        %v2293 = vpack.c.b16 %v2261, %v2261
        %v2294 = vpack.c.b16 %v2262, %v2262
        %v2295 = vpack.c.b16 %v2263, %v2263
        %v2296 = vpack.c.b16 %v2264, %v2264
        %v2297 = vpack.c.b16 %v2265, %v2265
        %v2298 = vpack.c.b16 %v2266, %v2266
        %v2299 = vpack.c.b16 %v2267, %v2267
        %v2300 = vpack.c.b16 %v2268, %v2268
        %v2301 = vpack.c.b16 %v2269, %v2269
        %v2302 = vpack.c.b16 %v2270, %v2270
        %v2303 = vpack.c.b16 %v2271, %v2271
        %v2304 = vpack.c.b16 %v2272, %v2272
        %v2305 = vpack.c.b16 %v2273, %v2273
        %2338 = vst [vmem:[%s176] sm:$0xf] %v2274
        %2339 = vst [vmem:[%s176 + $0x8] sm:$0xf] %v2275
        %2340 = vst [vmem:[%s176 + $0x10] sm:$0xf] %v2276
        %2341 = vst [vmem:[%s176 + $0x18] sm:$0xf] %v2277
        %2342 = vst [vmem:[%s176 + $0x20] sm:$0xf] %v2278
        %2343 = vst [vmem:[%s176 + $0x28] sm:$0xf] %v2279
        %2344 = vst [vmem:[%s176 + $0x30] sm:$0xf] %v2280
        %2345 = vst [vmem:[%s176 + $0x38] sm:$0xf] %v2281
        %2346 = vst [vmem:[%s176 + $0x40] sm:$0xf] %v2282
        %2347 = vst [vmem:[%s176 + $0x48] sm:$0xf] %v2283
        %2348 = vst [vmem:[%s176 + $0x50] sm:$0xf] %v2284
        %2349 = vst [vmem:[%s176 + $0x58] sm:$0xf] %v2285
        %2350 = vst [vmem:[%s176 + $0x60] sm:$0xf] %v2286
        %2351 = vst [vmem:[%s176 + $0x68] sm:$0xf] %v2287
        %2352 = vst [vmem:[%s176 + $0x70] sm:$0xf] %v2288
        %2353 = vst [vmem:[%s176 + $0x78] sm:$0xf] %v2289
        %2354 = vst [vmem:[%s176 + $0x80] sm:$0xf] %v2290
        %2355 = vst [vmem:[%s176 + $0x88] sm:$0xf] %v2291
        %2356 = vst [vmem:[%s176 + $0x90] sm:$0xf] %v2292
        %2357 = vst [vmem:[%s176 + $0x98] sm:$0xf] %v2293
        %2358 = vst [vmem:[%s176 + $0xa0] sm:$0xf] %v2294
        %2359 = vst [vmem:[%s176 + $0xa8] sm:$0xf] %v2295
        %2360 = vst [vmem:[%s176 + $0xb0] sm:$0xf] %v2296
        %2361 = vst [vmem:[%s176 + $0xb8] sm:$0xf] %v2297
        %2362 = vst [vmem:[%s176 + $0xc0] sm:$0xf] %v2298
        %2363 = vst [vmem:[%s176 + $0xc8] sm:$0xf] %v2299
        %2364 = vst [vmem:[%s176 + $0xd0] sm:$0xf] %v2300
        %2365 = vst [vmem:[%s176 + $0xd8] sm:$0xf] %v2301
        %2366 = vst [vmem:[%s176 + $0xe0] sm:$0xf] %v2302
        %2367 = vst [vmem:[%s176 + $0xe8] sm:$0xf] %v2303
        %2368 = vst [vmem:[%s176 + $0xf0] sm:$0xf] %v2304
        %2369 = vst [vmem:[%s176 + $0xf8] sm:$0xf] %v2305
        %v2370 = vunpack.c.l.b16 %v709
        %v2371 = vunpack.c.l.b16 %v712
        %v2372 = vunpack.c.l.b16 %v716
        %v2373 = vunpack.c.l.b16 %v719
        %v2374 = vunpack.c.l.b16 %v723
        %v2375 = vunpack.c.l.b16 %v726
        %v2376 = vunpack.c.l.b16 %v730
        %v2377 = vunpack.c.l.b16 %v733
        %v2378 = vunpack.c.l.b16 %v737
        %v2379 = vunpack.c.l.b16 %v740
        %v2380 = vunpack.c.l.b16 %v744
        %v2381 = vunpack.c.l.b16 %v747
        %v2382 = vunpack.c.l.b16 %v751
        %v2383 = vunpack.c.l.b16 %v754
        %v2384 = vunpack.c.l.b16 %v758
        %v2385 = vunpack.c.l.b16 %v761
        %v2386 = vunpack.c.l.b16 %v765
        %v2387 = vunpack.c.l.b16 %v768
        %v2388 = vunpack.c.l.b16 %v772
        %v2389 = vunpack.c.l.b16 %v775
        %v2390 = vunpack.c.l.b16 %v779
        %v2391 = vunpack.c.l.b16 %v782
        %v2392 = vunpack.c.l.b16 %v786
        %v2393 = vunpack.c.l.b16 %v789
        %v2394 = vunpack.c.l.b16 %v793
        %v2395 = vunpack.c.l.b16 %v796
        %v2396 = vunpack.c.l.b16 %v800
        %v2397 = vunpack.c.l.b16 %v803
        %v2398 = vunpack.c.l.b16 %v807
        %v2399 = vunpack.c.l.b16 %v810
        %v2400 = vunpack.c.l.b16 %v814
        %v2401 = vunpack.c.l.b16 %v817
        %v2402 = vpack.c.b16 %v2371, %v2370
        %v2403 = vpack.c.b16 %v2373, %v2372
        %v2404 = vpack.c.b16 %v2375, %v2374
        %v2405 = vpack.c.b16 %v2377, %v2376
        %v2406 = vpack.c.b16 %v2379, %v2378
        %v2407 = vpack.c.b16 %v2381, %v2380
        %v2408 = vpack.c.b16 %v2383, %v2382
        %v2409 = vpack.c.b16 %v2385, %v2384
        %v2410 = vpack.c.b16 %v2387, %v2386
        %v2411 = vpack.c.b16 %v2389, %v2388
        %v2412 = vpack.c.b16 %v2391, %v2390
        %v2413 = vpack.c.b16 %v2393, %v2392
        %v2414 = vpack.c.b16 %v2395, %v2394
        %v2415 = vpack.c.b16 %v2397, %v2396
        %v2416 = vpack.c.b16 %v2399, %v2398
        %v2417 = vpack.c.b16 %v2401, %v2400
        %2418 = vrot.lane.b32.xlu0 %v2402, 4
        %v2419 = vpop.permute.xlu0 %2418
        %2420 = vrot.lane.b32.xlu0 %v2403, 4
        %v2421 = vpop.permute.xlu0 %2420
        %2422 = vrot.lane.b32.xlu0 %v2404, 4
        %v2423 = vpop.permute.xlu0 %2422
        %2424 = vrot.lane.b32.xlu0 %v2405, 4
        %v2425 = vpop.permute.xlu0 %2424
        %2426 = vrot.lane.b32.xlu0 %v2406, 4
        %v2427 = vpop.permute.xlu0 %2426
        %2428 = vrot.lane.b32.xlu0 %v2407, 4
        %v2429 = vpop.permute.xlu0 %2428
        %2430 = vrot.lane.b32.xlu0 %v2408, 4
        %v2431 = vpop.permute.xlu0 %2430
        %2432 = vrot.lane.b32.xlu0 %v2409, 4
        %v2433 = vpop.permute.xlu0 %2432
        %2434 = vrot.lane.b32.xlu0 %v2410, 4
        %v2435 = vpop.permute.xlu0 %2434
        %2436 = vrot.lane.b32.xlu0 %v2411, 4
        %v2437 = vpop.permute.xlu0 %2436
        %2438 = vrot.lane.b32.xlu0 %v2412, 4
        %v2439 = vpop.permute.xlu0 %2438
        %2440 = vrot.lane.b32.xlu0 %v2413, 4
        %v2441 = vpop.permute.xlu0 %2440
        %2442 = vrot.lane.b32.xlu0 %v2414, 4
        %v2443 = vpop.permute.xlu0 %2442
        %2444 = vrot.lane.b32.xlu0 %v2415, 4
        %v2445 = vpop.permute.xlu0 %2444
        %2446 = vrot.lane.b32.xlu0 %v2416, 4
        %v2447 = vpop.permute.xlu0 %2446
        %2448 = vrot.lane.b32.xlu0 %v2417, 4
        %v2449 = vpop.permute.xlu0 %2448
        %2450 = vrot.lane.b32.xlu0 %v1702, 8
        %v2451 = vpop.permute.xlu0 %2450
        %2452 = vrot.lane.b32.xlu0 %v1703, 8
        %v2453 = vpop.permute.xlu0 %2452
        %2454 = vrot.lane.b32.xlu0 %v1704, 8
        %v2455 = vpop.permute.xlu0 %2454
        %2456 = vrot.lane.b32.xlu0 %v1705, 8
        %v2457 = vpop.permute.xlu0 %2456
        %2458 = vrot.lane.b32.xlu0 %v1706, 8
        %v2459 = vpop.permute.xlu0 %2458
        %2460 = vrot.lane.b32.xlu0 %v1707, 8
        %v2461 = vpop.permute.xlu0 %2460
        %2462 = vrot.lane.b32.xlu0 %v1708, 8
        %v2463 = vpop.permute.xlu0 %2462
        %2464 = vrot.lane.b32.xlu0 %v1709, 8
        %v2465 = vpop.permute.xlu0 %2464
        %2466 = vrot.lane.b32.xlu0 %v1710, 8
        %v2467 = vpop.permute.xlu0 %2466
        %2468 = vrot.lane.b32.xlu0 %v1711, 8
        %v2469 = vpop.permute.xlu0 %2468
        %2470 = vrot.lane.b32.xlu0 %v1712, 8
        %v2471 = vpop.permute.xlu0 %2470
        %2472 = vrot.lane.b32.xlu0 %v1713, 8
        %v2473 = vpop.permute.xlu0 %2472
        %2474 = vrot.lane.b32.xlu0 %v1714, 8
        %v2475 = vpop.permute.xlu0 %2474
        %2476 = vrot.lane.b32.xlu0 %v1715, 8
        %v2477 = vpop.permute.xlu0 %2476
        %2478 = vrot.lane.b32.xlu0 %v1716, 8
        %v2479 = vpop.permute.xlu0 %2478
        %2480 = vrot.lane.b32.xlu0 %v1717, 8
        %v2481 = vpop.permute.xlu0 %2480
        %v2482 = vunpack.c.l.b16 %v1321
        %v2483 = vunpack.c.l.b16 %v1324
        %v2484 = vunpack.c.l.b16 %v1328
        %v2485 = vunpack.c.l.b16 %v1331
        %v2486 = vunpack.c.l.b16 %v1335
        %v2487 = vunpack.c.l.b16 %v1338
        %v2488 = vunpack.c.l.b16 %v1342
        %v2489 = vunpack.c.l.b16 %v1345
        %v2490 = vunpack.c.l.b16 %v1349
        %v2491 = vunpack.c.l.b16 %v1352
        %v2492 = vunpack.c.l.b16 %v1356
        %v2493 = vunpack.c.l.b16 %v1359
        %v2494 = vunpack.c.l.b16 %v1363
        %v2495 = vunpack.c.l.b16 %v1366
        %v2496 = vunpack.c.l.b16 %v1370
        %v2497 = vunpack.c.l.b16 %v1373
        %v2498 = vunpack.c.l.b16 %v1377
        %v2499 = vunpack.c.l.b16 %v1380
        %v2500 = vunpack.c.l.b16 %v1384
        %v2501 = vunpack.c.l.b16 %v1387
        %v2502 = vunpack.c.l.b16 %v1391
        %v2503 = vunpack.c.l.b16 %v1394
        %v2504 = vunpack.c.l.b16 %v1398
        %v2505 = vunpack.c.l.b16 %v1401
        %v2506 = vunpack.c.l.b16 %v1405
        %v2507 = vunpack.c.l.b16 %v1408
        %v2508 = vunpack.c.l.b16 %v1412
        %v2509 = vunpack.c.l.b16 %v1415
        %v2510 = vunpack.c.l.b16 %v1419
        %v2511 = vunpack.c.l.b16 %v1422
        %v2512 = vunpack.c.l.b16 %v1426
        %v2513 = vunpack.c.l.b16 %v1429
        %v2514 = vpack.c.b16 %v2483, %v2482
        %v2515 = vpack.c.b16 %v2485, %v2484
        %v2516 = vpack.c.b16 %v2487, %v2486
        %v2517 = vpack.c.b16 %v2489, %v2488
        %v2518 = vpack.c.b16 %v2491, %v2490
        %v2519 = vpack.c.b16 %v2493, %v2492
        %v2520 = vpack.c.b16 %v2495, %v2494
        %v2521 = vpack.c.b16 %v2497, %v2496
        %v2522 = vpack.c.b16 %v2499, %v2498
        %v2523 = vpack.c.b16 %v2501, %v2500
        %v2524 = vpack.c.b16 %v2503, %v2502
        %v2525 = vpack.c.b16 %v2505, %v2504
        %v2526 = vpack.c.b16 %v2507, %v2506
        %v2527 = vpack.c.b16 %v2509, %v2508
        %v2528 = vpack.c.b16 %v2511, %v2510
        %v2529 = vpack.c.b16 %v2513, %v2512
        %2530 = vrot.lane.b32.xlu0 %v2514, 12
        %v2531 = vpop.permute.xlu0 %2530
        %2532 = vrot.lane.b32.xlu0 %v2515, 12
        %v2533 = vpop.permute.xlu0 %2532
        %2534 = vrot.lane.b32.xlu0 %v2516, 12
        %v2535 = vpop.permute.xlu0 %2534
        %2536 = vrot.lane.b32.xlu0 %v2517, 12
        %v2537 = vpop.permute.xlu0 %2536
        %2538 = vrot.lane.b32.xlu0 %v2518, 12
        %v2539 = vpop.permute.xlu0 %2538
        %2540 = vrot.lane.b32.xlu0 %v2519, 12
        %v2541 = vpop.permute.xlu0 %2540
        %2542 = vrot.lane.b32.xlu0 %v2520, 12
        %v2543 = vpop.permute.xlu0 %2542
        %2544 = vrot.lane.b32.xlu0 %v2521, 12
        %v2545 = vpop.permute.xlu0 %2544
        %2546 = vrot.lane.b32.xlu0 %v2522, 12
        %v2547 = vpop.permute.xlu0 %2546
        %2548 = vrot.lane.b32.xlu0 %v2523, 12
        %v2549 = vpop.permute.xlu0 %2548
        %2550 = vrot.lane.b32.xlu0 %v2524, 12
        %v2551 = vpop.permute.xlu0 %2550
        %2552 = vrot.lane.b32.xlu0 %v2525, 12
        %v2553 = vpop.permute.xlu0 %2552
        %2554 = vrot.lane.b32.xlu0 %v2526, 12
        %v2555 = vpop.permute.xlu0 %2554
        %2556 = vrot.lane.b32.xlu0 %v2527, 12
        %v2557 = vpop.permute.xlu0 %2556
        %2558 = vrot.lane.b32.xlu0 %v2528, 12
        %v2559 = vpop.permute.xlu0 %2558
        %2560 = vrot.lane.b32.xlu0 %v2529, 12
        %v2561 = vpop.permute.xlu0 %2560
        %v2564 = vsel %vm1750, %v1526, %v2419
        %v2567 = vsel %vm1750, %v1527, %v2421
        %v2570 = vsel %vm1750, %v1528, %v2423
        %v2573 = vsel %vm1750, %v1529, %v2425
        %v2576 = vsel %vm1750, %v1530, %v2427
        %v2579 = vsel %vm1750, %v1531, %v2429
        %v2582 = vsel %vm1750, %v1532, %v2431
        %v2585 = vsel %vm1750, %v1533, %v2433
        %v2588 = vsel %vm1750, %v1534, %v2435
        %v2591 = vsel %vm1750, %v1535, %v2437
        %v2594 = vsel %vm1750, %v1536, %v2439
        %v2597 = vsel %vm1750, %v1537, %v2441
        %v2600 = vsel %vm1750, %v1538, %v2443
        %v2603 = vsel %vm1750, %v1539, %v2445
        %v2606 = vsel %vm1750, %v1540, %v2447
        %v2609 = vsel %vm1750, %v1541, %v2449
        %v2611 = vsel %vm1799, %v2564, %v2451
        %v2613 = vsel %vm1799, %v2567, %v2453
        %v2615 = vsel %vm1799, %v2570, %v2455
        %v2617 = vsel %vm1799, %v2573, %v2457
        %v2619 = vsel %vm1799, %v2576, %v2459
        %v2621 = vsel %vm1799, %v2579, %v2461
        %v2623 = vsel %vm1799, %v2582, %v2463
        %v2625 = vsel %vm1799, %v2585, %v2465
        %v2627 = vsel %vm1799, %v2588, %v2467
        %v2629 = vsel %vm1799, %v2591, %v2469
        %v2631 = vsel %vm1799, %v2594, %v2471
        %v2633 = vsel %vm1799, %v2597, %v2473
        %v2635 = vsel %vm1799, %v2600, %v2475
        %v2637 = vsel %vm1799, %v2603, %v2477
        %v2639 = vsel %vm1799, %v2606, %v2479
        %v2641 = vsel %vm1799, %v2609, %v2481
        %v2643 = vsel %vm1832, %v2611, %v2531
        %v2645 = vsel %vm1832, %v2613, %v2533
        %v2647 = vsel %vm1832, %v2615, %v2535
        %v2649 = vsel %vm1832, %v2617, %v2537
        %v2651 = vsel %vm1832, %v2619, %v2539
        %v2653 = vsel %vm1832, %v2621, %v2541
        %v2655 = vsel %vm1832, %v2623, %v2543
        %v2657 = vsel %vm1832, %v2625, %v2545
        %v2659 = vsel %vm1832, %v2627, %v2547
        %v2661 = vsel %vm1832, %v2629, %v2549
        %v2663 = vsel %vm1832, %v2631, %v2551
        %v2665 = vsel %vm1832, %v2633, %v2553
        %v2667 = vsel %vm1832, %v2635, %v2555
        %v2669 = vsel %vm1832, %v2637, %v2557
        %v2671 = vsel %vm1832, %v2639, %v2559
        %v2673 = vsel %vm1832, %v2641, %v2561
        %s2674 = sadd.s32 2, %s1865
        %s2675 = smul.addr %s2674, 4
        %s2676 = scalar_lea.vmem %s1, %s2675
        %v2677 = vld [vmem:[%s2676] sm:$0xf]
        %v2678 = vld [vmem:[%s2676 + $0x4] sm:$0xf]
        %v2681 = vunpack.c.l.b16 %v2677
        %v2682 = vunpack.c.l.b16 %v2678
        %v2683 = vpack.c.b16 %v2682, %v2681
        %v2685 = vsel %vm1876, %v2643, 0
        %v2687 = vsel %vm1876, %v2645, 0
        %v2689 = vsel %vm1876, %v2647, 0
        %v2691 = vsel %vm1876, %v2649, 0
        %v2693 = vsel %vm1876, %v2651, 0
        %v2695 = vsel %vm1876, %v2653, 0
        %v2697 = vsel %vm1876, %v2655, 0
        %v2699 = vsel %vm1876, %v2657, 0
        %v2701 = vsel %vm1876, %v2659, 0
        %v2703 = vsel %vm1876, %v2661, 0
        %v2705 = vsel %vm1876, %v2663, 0
        %v2707 = vsel %vm1876, %v2665, 0
        %v2709 = vsel %vm1876, %v2667, 0
        %v2711 = vsel %vm1876, %v2669, 0
        %v2713 = vsel %vm1876, %v2671, 0
        %v2715 = vsel %vm1876, %v2673, 0
        %2717 = vmatprep.subr.bf16.mxu0 0
        %2718 = vmatpush1.bf16.msra.mxu0 %v2683
        %2719 = vmatprep.subr.bf16.mxu0 0
        %2720 = vmatpush1.bf16.msra.mxu0 0
        %2721 = vmatprep.subr.bf16.mxu0 0
        %2722 = vmatpush1.bf16.msra.mxu0 0
        %2723 = vmatprep.subr.bf16.mxu0 0
        %2724 = vmatpush1.bf16.msra.mxu0 0
        %2725 = vmatprep.subr.bf16.mxu0 0
        %2726 = vmatpush1.bf16.msra.mxu0 0
        %2727 = vmatprep.subr.bf16.mxu0 0
        %2728 = vmatpush1.bf16.msra.mxu0 0
        %2729 = vmatprep.subr.bf16.mxu0 0
        %2730 = vmatpush1.bf16.msra.mxu0 0
        %2731 = vmatprep.subr.bf16.mxu0 0
        %2732 = vmatpush1.bf16.msra.mxu0 0
        %2733 = vmatprep.subr.bf16.mxu0 0
        %2734 = vmatpush1.bf16.msra.mxu0 0
        %2735 = vmatprep.subr.bf16.mxu0 0
        %2736 = vmatpush1.bf16.msra.mxu0 0
        %2737 = vmatprep.subr.bf16.mxu0 0
        %2738 = vmatpush1.bf16.msra.mxu0 0
        %2739 = vmatprep.subr.bf16.mxu0 0
        %2740 = vmatpush1.bf16.msra.mxu0 0
        %2741 = vmatprep.subr.bf16.mxu0 0
        %2742 = vmatpush1.bf16.msra.mxu0 0
        %2743 = vmatprep.subr.bf16.mxu0 0
        %2744 = vmatpush1.bf16.msra.mxu0 0
        %2745 = vmatprep.subr.bf16.mxu0 0
        %2746 = vmatpush1.bf16.msra.mxu0 0
        %2747 = vmatprep.subr.bf16.mxu0 0
        %2748 = vmatpush1.bf16.msra.mxu0 0
        %2749 = vmatprep.mubr.bf16.mxu0 0
        %2750 = vmatmul.mubr.bf16.gmra.mrb[0].mxu0 %v2685
        %v2751 = vpop.f32.mrb[0].mxu0
        %v2752 = vadd.f32 0.0, %v2751
        %v2753 = vpop.f32.mrb[0].mxu0
        %v2754 = vpop.f32.mrb[0].mxu0
        %v2755 = vadd.f32 0.0, %v2754
        %v2756 = vpop.f32.mrb[0].mxu0
        %2757 = vmatprep.mubr.bf16.mxu0 0
        %2758 = vmatmul.mubr.bf16.gmra.mrb[0].mxu0 %v2687
        %v2759 = vpop.f32.mrb[0].mxu0
        %v2760 = vadd.f32 0.0, %v2759
        %v2761 = vpop.f32.mrb[0].mxu0
        %v2762 = vpop.f32.mrb[0].mxu0
        %v2763 = vadd.f32 0.0, %v2762
        %v2764 = vpop.f32.mrb[0].mxu0
        %2765 = vmatprep.mubr.bf16.mxu0 0
        %2766 = vmatmul.mubr.bf16.gmra.mrb[0].mxu0 %v2689
        %v2767 = vpop.f32.mrb[0].mxu0
        %v2768 = vadd.f32 0.0, %v2767
        %v2769 = vpop.f32.mrb[0].mxu0
        %v2770 = vpop.f32.mrb[0].mxu0
        %v2771 = vadd.f32 0.0, %v2770
        %v2772 = vpop.f32.mrb[0].mxu0
        %2773 = vmatprep.mubr.bf16.mxu0 0
        %2774 = vmatmul.mubr.bf16.gmra.mrb[0].mxu0 %v2691
        %v2775 = vpop.f32.mrb[0].mxu0
        %v2776 = vadd.f32 0.0, %v2775
        %v2777 = vpop.f32.mrb[0].mxu0
        %v2778 = vpop.f32.mrb[0].mxu0
        %v2779 = vadd.f32 0.0, %v2778
        %v2780 = vpop.f32.mrb[0].mxu0
        %2781 = vmatprep.mubr.bf16.mxu0 0
        %2782 = vmatmul.mubr.bf16.gmra.mrb[0].mxu0 %v2693
        %v2783 = vpop.f32.mrb[0].mxu0
        %v2784 = vadd.f32 0.0, %v2783
        %v2785 = vpop.f32.mrb[0].mxu0
        %v2786 = vpop.f32.mrb[0].mxu0
        %v2787 = vadd.f32 0.0, %v2786
        %v2788 = vpop.f32.mrb[0].mxu0
        %2789 = vmatprep.mubr.bf16.mxu0 0
        %2790 = vmatmul.mubr.bf16.gmra.mrb[0].mxu0 %v2695
        %v2791 = vpop.f32.mrb[0].mxu0
        %v2792 = vadd.f32 0.0, %v2791
        %v2793 = vpop.f32.mrb[0].mxu0
        %v2794 = vpop.f32.mrb[0].mxu0
        %v2795 = vadd.f32 0.0, %v2794
        %v2796 = vpop.f32.mrb[0].mxu0
        %2797 = vmatprep.mubr.bf16.mxu0 0
        %2798 = vmatmul.mubr.bf16.gmra.mrb[0].mxu0 %v2697
        %v2799 = vpop.f32.mrb[0].mxu0
        %v2800 = vadd.f32 0.0, %v2799
        %v2801 = vpop.f32.mrb[0].mxu0
        %v2802 = vpop.f32.mrb[0].mxu0
        %v2803 = vadd.f32 0.0, %v2802
        %v2804 = vpop.f32.mrb[0].mxu0
        %2805 = vmatprep.mubr.bf16.mxu0 0
        %2806 = vmatmul.mubr.bf16.gmra.mrb[0].mxu0 %v2699
        %v2807 = vpop.f32.mrb[0].mxu0
        %v2808 = vadd.f32 0.0, %v2807
        %v2809 = vpop.f32.mrb[0].mxu0
        %v2810 = vpop.f32.mrb[0].mxu0
        %v2811 = vadd.f32 0.0, %v2810
        %v2812 = vpop.f32.mrb[0].mxu0
        %2813 = vmatprep.mubr.bf16.mxu0 0
        %2814 = vmatmul.mubr.bf16.gmra.mrb[0].mxu0 %v2701
        %v2815 = vpop.f32.mrb[0].mxu0
        %v2816 = vadd.f32 0.0, %v2815
        %v2817 = vpop.f32.mrb[0].mxu0
        %v2818 = vpop.f32.mrb[0].mxu0
        %v2819 = vadd.f32 0.0, %v2818
        %v2820 = vpop.f32.mrb[0].mxu0
        %2821 = vmatprep.mubr.bf16.mxu0 0
        %2822 = vmatmul.mubr.bf16.gmra.mrb[0].mxu0 %v2703
        %v2823 = vpop.f32.mrb[0].mxu0
        %v2824 = vadd.f32 0.0, %v2823
        %v2825 = vpop.f32.mrb[0].mxu0
        %v2826 = vpop.f32.mrb[0].mxu0
        %v2827 = vadd.f32 0.0, %v2826
        %v2828 = vpop.f32.mrb[0].mxu0
        %2829 = vmatprep.mubr.bf16.mxu0 0
        %2830 = vmatmul.mubr.bf16.gmra.mrb[0].mxu0 %v2705
        %v2831 = vpop.f32.mrb[0].mxu0
        %v2832 = vadd.f32 0.0, %v2831
        %v2833 = vpop.f32.mrb[0].mxu0
        %v2834 = vpop.f32.mrb[0].mxu0
        %v2835 = vadd.f32 0.0, %v2834
        %v2836 = vpop.f32.mrb[0].mxu0
        %2837 = vmatprep.mubr.bf16.mxu0 0
        %2838 = vmatmul.mubr.bf16.gmra.mrb[0].mxu0 %v2707
        %v2839 = vpop.f32.mrb[0].mxu0
        %v2840 = vadd.f32 0.0, %v2839
        %v2841 = vpop.f32.mrb[0].mxu0
        %v2842 = vpop.f32.mrb[0].mxu0
        %v2843 = vadd.f32 0.0, %v2842
        %v2844 = vpop.f32.mrb[0].mxu0
        %2845 = vmatprep.mubr.bf16.mxu0 0
        %2846 = vmatmul.mubr.bf16.gmra.mrb[0].mxu0 %v2709
        %v2847 = vpop.f32.mrb[0].mxu0
        %v2848 = vadd.f32 0.0, %v2847
        %v2849 = vpop.f32.mrb[0].mxu0
        %v2850 = vpop.f32.mrb[0].mxu0
        %v2851 = vadd.f32 0.0, %v2850
        %v2852 = vpop.f32.mrb[0].mxu0
        %2853 = vmatprep.mubr.bf16.mxu0 0
        %2854 = vmatmul.mubr.bf16.gmra.mrb[0].mxu0 %v2711
        %v2855 = vpop.f32.mrb[0].mxu0
        %v2856 = vadd.f32 0.0, %v2855
        %v2857 = vpop.f32.mrb[0].mxu0
        %v2858 = vpop.f32.mrb[0].mxu0
        %v2859 = vadd.f32 0.0, %v2858
        %v2860 = vpop.f32.mrb[0].mxu0
        %2861 = vmatprep.mubr.bf16.mxu0 0
        %2862 = vmatmul.mubr.bf16.gmra.mrb[0].mxu0 %v2713
        %v2863 = vpop.f32.mrb[0].mxu0
        %v2864 = vadd.f32 0.0, %v2863
        %v2865 = vpop.f32.mrb[0].mxu0
        %v2866 = vpop.f32.mrb[0].mxu0
        %v2867 = vadd.f32 0.0, %v2866
        %v2868 = vpop.f32.mrb[0].mxu0
        %2869 = vmatprep.mubr.bf16.mxu0 0
        %2870 = vmatmul.mubr.bf16.gmra.mrb[0].mxu0 %v2715
        %v2871 = vpop.f32.mrb[0].mxu0
        %v2872 = vadd.f32 0.0, %v2871
        %v2873 = vpop.f32.mrb[0].mxu0
        %v2874 = vpop.f32.mrb[0].mxu0
        %v2875 = vadd.f32 0.0, %v2874
        %v2876 = vpop.f32.mrb[0].mxu0
        %2877 = vdwg.mxu0
        %v2878 = vmax.f32 %v2752, 0.0
        %v2879 = vmax.f32 %v2755, 0.0
        %v2880 = vmax.f32 %v2760, 0.0
        %v2881 = vmax.f32 %v2763, 0.0
        %v2882 = vmax.f32 %v2768, 0.0
        %v2883 = vmax.f32 %v2771, 0.0
        %v2884 = vmax.f32 %v2776, 0.0
        %v2885 = vmax.f32 %v2779, 0.0
        %v2886 = vmax.f32 %v2784, 0.0
        %v2887 = vmax.f32 %v2787, 0.0
        %v2888 = vmax.f32 %v2792, 0.0
        %v2889 = vmax.f32 %v2795, 0.0
        %v2890 = vmax.f32 %v2800, 0.0
        %v2891 = vmax.f32 %v2803, 0.0
        %v2892 = vmax.f32 %v2808, 0.0
        %v2893 = vmax.f32 %v2811, 0.0
        %v2894 = vmax.f32 %v2816, 0.0
        %v2895 = vmax.f32 %v2819, 0.0
        %v2896 = vmax.f32 %v2824, 0.0
        %v2897 = vmax.f32 %v2827, 0.0
        %v2898 = vmax.f32 %v2832, 0.0
        %v2899 = vmax.f32 %v2835, 0.0
        %v2900 = vmax.f32 %v2840, 0.0
        %v2901 = vmax.f32 %v2843, 0.0
        %v2902 = vmax.f32 %v2848, 0.0
        %v2903 = vmax.f32 %v2851, 0.0
        %v2904 = vmax.f32 %v2856, 0.0
        %v2905 = vmax.f32 %v2859, 0.0
        %v2906 = vmax.f32 %v2864, 0.0
        %v2907 = vmax.f32 %v2867, 0.0
        %v2908 = vmax.f32 %v2872, 0.0
        %v2909 = vmax.f32 %v2875, 0.0
        %v2910 = vadd.f32 %v2878, %v2879
        %v2911 = vadd.f32 %v2910, %v2880
        %v2912 = vadd.f32 %v2911, %v2881
        %v2913 = vadd.f32 %v2912, %v2882
        %v2914 = vadd.f32 %v2913, %v2883
        %v2915 = vadd.f32 %v2914, %v2884
        %v2916 = vadd.f32 %v2915, %v2885
        %v2917 = vadd.f32 %v2916, %v2886
        %v2918 = vadd.f32 %v2917, %v2887
        %v2919 = vadd.f32 %v2918, %v2888
        %v2920 = vadd.f32 %v2919, %v2889
        %v2921 = vadd.f32 %v2920, %v2890
        %v2922 = vadd.f32 %v2921, %v2891
        %v2923 = vadd.f32 %v2922, %v2892
        %v2924 = vadd.f32 %v2923, %v2893
        %v2925 = vadd.f32 %v2924, %v2894
        %v2926 = vadd.f32 %v2925, %v2895
        %v2927 = vadd.f32 %v2926, %v2896
        %v2928 = vadd.f32 %v2927, %v2897
        %v2929 = vadd.f32 %v2928, %v2898
        %v2930 = vadd.f32 %v2929, %v2899
        %v2931 = vadd.f32 %v2930, %v2900
        %v2932 = vadd.f32 %v2931, %v2901
        %v2933 = vadd.f32 %v2932, %v2902
        %v2934 = vadd.f32 %v2933, %v2903
        %v2935 = vadd.f32 %v2934, %v2904
        %v2936 = vadd.f32 %v2935, %v2905
        %v2937 = vadd.f32 %v2936, %v2906
        %v2938 = vadd.f32 %v2937, %v2907
        %v2939 = vadd.f32 %v2938, %v2908
        %v2940 = vadd.f32 %v2939, %v2909
        %v2941 = vrot.slane %v2940, 4
        %v2942 = vadd.f32 %v2940, %v2941
        %v2943 = vrot.slane %v2942, 2
        %v2944 = vadd.f32 %v2942, %v2943
        %v2945 = vrot.slane %v2944, 1
        %v2946 = vadd.f32 %v2944, %v2945
        %v2947 = vadd.f32 %v2139, %v2946
        %v2948 = vmul.f32 %v2878, %v2878
        %v2949 = vmul.f32 %v2879, %v2879
        %v2950 = vmul.f32 %v2880, %v2880
        %v2951 = vmul.f32 %v2881, %v2881
        %v2952 = vmul.f32 %v2882, %v2882
        %v2953 = vmul.f32 %v2883, %v2883
        %v2954 = vmul.f32 %v2884, %v2884
        %v2955 = vmul.f32 %v2885, %v2885
        %v2956 = vmul.f32 %v2886, %v2886
        %v2957 = vmul.f32 %v2887, %v2887
        %v2958 = vmul.f32 %v2888, %v2888
        %v2959 = vmul.f32 %v2889, %v2889
        %v2960 = vmul.f32 %v2890, %v2890
        %v2961 = vmul.f32 %v2891, %v2891
        %v2962 = vmul.f32 %v2892, %v2892
        %v2963 = vmul.f32 %v2893, %v2893
        %v2964 = vmul.f32 %v2894, %v2894
        %v2965 = vmul.f32 %v2895, %v2895
        %v2966 = vmul.f32 %v2896, %v2896
        %v2967 = vmul.f32 %v2897, %v2897
        %v2968 = vmul.f32 %v2898, %v2898
        %v2969 = vmul.f32 %v2899, %v2899
        %v2970 = vmul.f32 %v2900, %v2900
        %v2971 = vmul.f32 %v2901, %v2901
        %v2972 = vmul.f32 %v2902, %v2902
        %v2973 = vmul.f32 %v2903, %v2903
        %v2974 = vmul.f32 %v2904, %v2904
        %v2975 = vmul.f32 %v2905, %v2905
        %v2976 = vmul.f32 %v2906, %v2906
        %v2977 = vmul.f32 %v2907, %v2907
        %v2978 = vmul.f32 %v2908, %v2908
        %v2979 = vmul.f32 %v2909, %v2909
        %v2980 = vadd.f32 %v2948, %v2949
        %v2981 = vadd.f32 %v2980, %v2950
        %v2982 = vadd.f32 %v2981, %v2951
        %v2983 = vadd.f32 %v2982, %v2952
        %v2984 = vadd.f32 %v2983, %v2953
        %v2985 = vadd.f32 %v2984, %v2954
        %v2986 = vadd.f32 %v2985, %v2955
        %v2987 = vadd.f32 %v2986, %v2956
        %v2988 = vadd.f32 %v2987, %v2957
        %v2989 = vadd.f32 %v2988, %v2958
        %v2990 = vadd.f32 %v2989, %v2959
        %v2991 = vadd.f32 %v2990, %v2960
        %v2992 = vadd.f32 %v2991, %v2961
        %v2993 = vadd.f32 %v2992, %v2962
        %v2994 = vadd.f32 %v2993, %v2963
        %v2995 = vadd.f32 %v2994, %v2964
        %v2996 = vadd.f32 %v2995, %v2965
        %v2997 = vadd.f32 %v2996, %v2966
        %v2998 = vadd.f32 %v2997, %v2967
        %v2999 = vadd.f32 %v2998, %v2968
        %v3000 = vadd.f32 %v2999, %v2969
        %v3001 = vadd.f32 %v3000, %v2970
        %v3002 = vadd.f32 %v3001, %v2971
        %v3003 = vadd.f32 %v3002, %v2972
        %v3004 = vadd.f32 %v3003, %v2973
        %v3005 = vadd.f32 %v3004, %v2974
        %v3006 = vadd.f32 %v3005, %v2975
        %v3007 = vadd.f32 %v3006, %v2976
        %v3008 = vadd.f32 %v3007, %v2977
        %v3009 = vadd.f32 %v3008, %v2978
        %v3010 = vadd.f32 %v3009, %v2979
        %v3011 = vrot.slane %v3010, 4
        %v3012 = vadd.f32 %v3010, %v3011
        %v3013 = vrot.slane %v3012, 2
        %v3014 = vadd.f32 %v3012, %v3013
        %v3015 = vrot.slane %v3014, 1
        %v3016 = vadd.f32 %v3014, %v3015
        %v3017 = vadd.f32 %v2209, %v3016
        %v3018 = vpack.c.bf16 %v2879, %v2878
        %v3019 = vpack.c.bf16 %v2881, %v2880
        %v3020 = vpack.c.bf16 %v2883, %v2882
        %v3021 = vpack.c.bf16 %v2885, %v2884
        %v3022 = vpack.c.bf16 %v2887, %v2886
        %v3023 = vpack.c.bf16 %v2889, %v2888
        %v3024 = vpack.c.bf16 %v2891, %v2890
        %v3025 = vpack.c.bf16 %v2893, %v2892
        %v3026 = vpack.c.bf16 %v2895, %v2894
        %v3027 = vpack.c.bf16 %v2897, %v2896
        %v3028 = vpack.c.bf16 %v2899, %v2898
        %v3029 = vpack.c.bf16 %v2901, %v2900
        %v3030 = vpack.c.bf16 %v2903, %v2902
        %v3031 = vpack.c.bf16 %v2905, %v2904
        %v3032 = vpack.c.bf16 %v2907, %v2906
        %v3033 = vpack.c.bf16 %v2909, %v2908
        %v3050 = vunpack.c.l.b16 %v3018
        %v3051 = vunpack.c.h.b16 %v3018
        %v3052 = vunpack.c.l.b16 %v3019
        %v3053 = vunpack.c.h.b16 %v3019
        %v3054 = vunpack.c.l.b16 %v3020
        %v3055 = vunpack.c.h.b16 %v3020
        %v3056 = vunpack.c.l.b16 %v3021
        %v3057 = vunpack.c.h.b16 %v3021
        %v3058 = vunpack.c.l.b16 %v3022
        %v3059 = vunpack.c.h.b16 %v3022
        %v3060 = vunpack.c.l.b16 %v3023
        %v3061 = vunpack.c.h.b16 %v3023
        %v3062 = vunpack.c.l.b16 %v3024
        %v3063 = vunpack.c.h.b16 %v3024
        %v3064 = vunpack.c.l.b16 %v3025
        %v3065 = vunpack.c.h.b16 %v3025
        %v3066 = vunpack.c.l.b16 %v3026
        %v3067 = vunpack.c.h.b16 %v3026
        %v3068 = vunpack.c.l.b16 %v3027
        %v3069 = vunpack.c.h.b16 %v3027
        %v3070 = vunpack.c.l.b16 %v3028
        %v3071 = vunpack.c.h.b16 %v3028
        %v3072 = vunpack.c.l.b16 %v3029
        %v3073 = vunpack.c.h.b16 %v3029
        %v3074 = vunpack.c.l.b16 %v3030
        %v3075 = vunpack.c.h.b16 %v3030
        %v3076 = vunpack.c.l.b16 %v3031
        %v3077 = vunpack.c.h.b16 %v3031
        %v3078 = vunpack.c.l.b16 %v3032
        %v3079 = vunpack.c.h.b16 %v3032
        %v3080 = vunpack.c.l.b16 %v3033
        %v3081 = vunpack.c.h.b16 %v3033
        %v3082 = vpack.c.b16 %v3050, %v3050
        %v3083 = vpack.c.b16 %v3051, %v3051
        %v3084 = vpack.c.b16 %v3052, %v3052
        %v3085 = vpack.c.b16 %v3053, %v3053
        %v3086 = vpack.c.b16 %v3054, %v3054
        %v3087 = vpack.c.b16 %v3055, %v3055
        %v3088 = vpack.c.b16 %v3056, %v3056
        %v3089 = vpack.c.b16 %v3057, %v3057
        %v3090 = vpack.c.b16 %v3058, %v3058
        %v3091 = vpack.c.b16 %v3059, %v3059
        %v3092 = vpack.c.b16 %v3060, %v3060
        %v3093 = vpack.c.b16 %v3061, %v3061
        %v3094 = vpack.c.b16 %v3062, %v3062
        %v3095 = vpack.c.b16 %v3063, %v3063
        %v3096 = vpack.c.b16 %v3064, %v3064
        %v3097 = vpack.c.b16 %v3065, %v3065
        %v3098 = vpack.c.b16 %v3066, %v3066
        %v3099 = vpack.c.b16 %v3067, %v3067
        %v3100 = vpack.c.b16 %v3068, %v3068
        %v3101 = vpack.c.b16 %v3069, %v3069
        %v3102 = vpack.c.b16 %v3070, %v3070
        %v3103 = vpack.c.b16 %v3071, %v3071
        %v3104 = vpack.c.b16 %v3072, %v3072
        %v3105 = vpack.c.b16 %v3073, %v3073
        %v3106 = vpack.c.b16 %v3074, %v3074
        %v3107 = vpack.c.b16 %v3075, %v3075
        %v3108 = vpack.c.b16 %v3076, %v3076
        %v3109 = vpack.c.b16 %v3077, %v3077
        %v3110 = vpack.c.b16 %v3078, %v3078
        %v3111 = vpack.c.b16 %v3079, %v3079
        %v3112 = vpack.c.b16 %v3080, %v3080
        %v3113 = vpack.c.b16 %v3081, %v3081
        %3146 = vst [vmem:[%s176 + $0x4] sm:$0xf] %v3082
        %3147 = vst [vmem:[%s176 + $0xc] sm:$0xf] %v3083
        %3148 = vst [vmem:[%s176 + $0x14] sm:$0xf] %v3084
        %3149 = vst [vmem:[%s176 + $0x1c] sm:$0xf] %v3085
        %3150 = vst [vmem:[%s176 + $0x24] sm:$0xf] %v3086
        %3151 = vst [vmem:[%s176 + $0x2c] sm:$0xf] %v3087
        %3152 = vst [vmem:[%s176 + $0x34] sm:$0xf] %v3088
        %3153 = vst [vmem:[%s176 + $0x3c] sm:$0xf] %v3089
        %3154 = vst [vmem:[%s176 + $0x44] sm:$0xf] %v3090
        %3155 = vst [vmem:[%s176 + $0x4c] sm:$0xf] %v3091
        %3156 = vst [vmem:[%s176 + $0x54] sm:$0xf] %v3092
        %3157 = vst [vmem:[%s176 + $0x5c] sm:$0xf] %v3093
        %3158 = vst [vmem:[%s176 + $0x64] sm:$0xf] %v3094
        %3159 = vst [vmem:[%s176 + $0x6c] sm:$0xf] %v3095
        %3160 = vst [vmem:[%s176 + $0x74] sm:$0xf] %v3096
        %3161 = vst [vmem:[%s176 + $0x7c] sm:$0xf] %v3097
        %3162 = vst [vmem:[%s176 + $0x84] sm:$0xf] %v3098
        %3163 = vst [vmem:[%s176 + $0x8c] sm:$0xf] %v3099
        %3164 = vst [vmem:[%s176 + $0x94] sm:$0xf] %v3100
        %3165 = vst [vmem:[%s176 + $0x9c] sm:$0xf] %v3101
        %3166 = vst [vmem:[%s176 + $0xa4] sm:$0xf] %v3102
        %3167 = vst [vmem:[%s176 + $0xac] sm:$0xf] %v3103
        %3168 = vst [vmem:[%s176 + $0xb4] sm:$0xf] %v3104
        %3169 = vst [vmem:[%s176 + $0xbc] sm:$0xf] %v3105
        %3170 = vst [vmem:[%s176 + $0xc4] sm:$0xf] %v3106
        %3171 = vst [vmem:[%s176 + $0xcc] sm:$0xf] %v3107
        %3172 = vst [vmem:[%s176 + $0xd4] sm:$0xf] %v3108
        %3173 = vst [vmem:[%s176 + $0xdc] sm:$0xf] %v3109
        %3174 = vst [vmem:[%s176 + $0xe4] sm:$0xf] %v3110
        %3175 = vst [vmem:[%s176 + $0xec] sm:$0xf] %v3111
        %3176 = vst [vmem:[%s176 + $0xf4] sm:$0xf] %v3112
        %3177 = vst [vmem:[%s176 + $0xfc] sm:$0xf] %v3113
        %3178 = vst [vmem:[%s199] sm:$0x1] %v2947
        %3179 = vst [vmem:[%s199 + $0x1] sm:$0x1] %v3017
        %s3180 = sand.u32 %s84, 1
        %s3181 = sand.u32 %s84, 1
        %s3182 = smul.addr %s3181, 256
        %s3183 = scalar_lea.vmem [#allocation2], %s3182
        %p3184 = scmp.lt.s32.totalorder %s19, 1
        %s3185 = scalar_select %p3184, %s19, 1
        %p3186 = scmp.lt.s32.totalorder %s20, 1
        %s3187 = scalar_select %p3186, %s20, 1
        %s3188 = smul.addr %s3185, 2
        %s3189 = sadd.s32 %s3187, %s3188
        %s3190 = smul.addr %s3189, 2
        %s3191 = scalar_lea.vmem %s3, %s3190
        // Predicated region
        $region29: #{deconv_block_forward.1} parent=27 // pred_check
          %p3192 = pneg %p94
        $region30: #{deconv_block_forward.1} parent=27 // pred_check_branch
          %3194 = sbr.rel (%p3192) target = $region32
        $region31: #{deconv_block_forward.1} parent=27 // pred_region
          %s3195 = smul.addr %s20, 4
          %s3196 = smul.addr %s19, 128
          %s3197 = sadd.s32 %s3195, %s3196
          %s3198 = smul.addr %s3197, 4
          %s3199 = scalar_lea.vmem %s2, %s3198
          // Predicated region
          $region33: #{deconv_block_forward.1} parent=31 // pred_check
            _
          $region34: #{deconv_block_forward.1} parent=31 // pred_check_branch
            %3201 = sbr.rel (0) target = $region36
          $region35: #{deconv_block_forward.1} parent=31 // pred_region
            // Predicated region
            $region37: #{deconv_block_forward.1} parent=35 // pred_check
              _
            $region38: #{deconv_block_forward.1} parent=35 // pred_check_branch
              %3203 = sbr.rel (0) target = $region40
            $region39: #{deconv_block_forward.1} parent=35 // pred_region
              // Predicated region
              $region52: #{deconv_block_forward.1} parent=39 // pred_check
                _
              $region53: #{deconv_block_forward.1} parent=39 // pred_check_branch
                %3280 = sbr.rel (0) target = $region55
              $region54: #{deconv_block_forward.1} parent=39 // pred_region
                loop: start=0, step=1, limit=1
                $region56: #{deconv_block_forward.1} parent=54 // loop_pre_header
                  _
                $region57: #{deconv_block_forward.1} parent=54 // loop_header
                  %s3282 = sphi 0, %s3286
                  %p3283 = scmp.ge.s32.totalorder %s3282, 1
                  %s3287 = sphi %s3183, %s3183
                  %s3288 = sphi %s3199, %s3199
                $region58: #{deconv_block_forward.1} parent=54 // loop_header_branch
                  %3285 = sbr.rel (%p3283) target = $region62
                $region59: #{deconv_block_forward.1} parent=54 // loop_body
                  %v3289 = vld [vmem:[%s3287] sm:$0xff]
                  %3290 = vst [vmem:[%s3288] sm:$0xff] %v3289
                  %v3291 = vld [vmem:[%s3287 + $0x8] sm:$0xff]
                  %3292 = vst [vmem:[%s3288 + $0x8] sm:$0xff] %v3291
                  %v3293 = vld [vmem:[%s3287 + $0x10] sm:$0xff]
                  %3294 = vst [vmem:[%s3288 + $0x20] sm:$0xff] %v3293
                  %v3295 = vld [vmem:[%s3287 + $0x18] sm:$0xff]
                  %3296 = vst [vmem:[%s3288 + $0x28] sm:$0xff] %v3295
                  %v3297 = vld [vmem:[%s3287 + $0x20] sm:$0xff]
                  %3298 = vst [vmem:[%s3288 + $0x40] sm:$0xff] %v3297
                  %v3299 = vld [vmem:[%s3287 + $0x28] sm:$0xff]
                  %3300 = vst [vmem:[%s3288 + $0x48] sm:$0xff] %v3299
                  %v3301 = vld [vmem:[%s3287 + $0x30] sm:$0xff]
                  %3302 = vst [vmem:[%s3288 + $0x60] sm:$0xff] %v3301
                  %v3303 = vld [vmem:[%s3287 + $0x38] sm:$0xff]
                  %3304 = vst [vmem:[%s3288 + $0x68] sm:$0xff] %v3303
                  %v3305 = vld [vmem:[%s3287 + $0x40] sm:$0xff]
                  %3306 = vst [vmem:[%s3288 + $0x80] sm:$0xff] %v3305
                  %v3307 = vld [vmem:[%s3287 + $0x48] sm:$0xff]
                  %3308 = vst [vmem:[%s3288 + $0x88] sm:$0xff] %v3307
                  %v3309 = vld [vmem:[%s3287 + $0x50] sm:$0xff]
                  %3310 = vst [vmem:[%s3288 + $0xa0] sm:$0xff] %v3309
                  %v3311 = vld [vmem:[%s3287 + $0x58] sm:$0xff]
                  %3312 = vst [vmem:[%s3288 + $0xa8] sm:$0xff] %v3311
                  %v3313 = vld [vmem:[%s3287 + $0x60] sm:$0xff]
                  %3314 = vst [vmem:[%s3288 + $0xc0] sm:$0xff] %v3313
                  %v3315 = vld [vmem:[%s3287 + $0x68] sm:$0xff]
                  %3316 = vst [vmem:[%s3288 + $0xc8] sm:$0xff] %v3315
                  %v3317 = vld [vmem:[%s3287 + $0x70] sm:$0xff]
                  %3318 = vst [vmem:[%s3288 + $0xe0] sm:$0xff] %v3317
                  %v3319 = vld [vmem:[%s3287 + $0x78] sm:$0xff]
                  %3320 = vst [vmem:[%s3288 + $0xe8] sm:$0xff] %v3319
                  %v3321 = vld [vmem:[%s3287 + $0x80] sm:$0xff]
                  %3322 = vst [vmem:[%s3288 + $0x100] sm:$0xff] %v3321
                  %v3323 = vld [vmem:[%s3287 + $0x88] sm:$0xff]
                  %3324 = vst [vmem:[%s3288 + $0x108] sm:$0xff] %v3323
                  %v3325 = vld [vmem:[%s3287 + $0x90] sm:$0xff]
                  %3326 = vst [vmem:[%s3288 + $0x120] sm:$0xff] %v3325
                  %v3327 = vld [vmem:[%s3287 + $0x98] sm:$0xff]
                  %3328 = vst [vmem:[%s3288 + $0x128] sm:$0xff] %v3327
                  %v3329 = vld [vmem:[%s3287 + $0xa0] sm:$0xff]
                  %3330 = vst [vmem:[%s3288 + $0x140] sm:$0xff] %v3329
                  %v3331 = vld [vmem:[%s3287 + $0xa8] sm:$0xff]
                  %3332 = vst [vmem:[%s3288 + $0x148] sm:$0xff] %v3331
                  %v3333 = vld [vmem:[%s3287 + $0xb0] sm:$0xff]
                  %3334 = vst [vmem:[%s3288 + $0x160] sm:$0xff] %v3333
                  %v3335 = vld [vmem:[%s3287 + $0xb8] sm:$0xff]
                  %3336 = vst [vmem:[%s3288 + $0x168] sm:$0xff] %v3335
                  %v3337 = vld [vmem:[%s3287 + $0xc0] sm:$0xff]
                  %3338 = vst [vmem:[%s3288 + $0x180] sm:$0xff] %v3337
                  %v3339 = vld [vmem:[%s3287 + $0xc8] sm:$0xff]
                  %3340 = vst [vmem:[%s3288 + $0x188] sm:$0xff] %v3339
                  %v3341 = vld [vmem:[%s3287 + $0xd0] sm:$0xff]
                  %3342 = vst [vmem:[%s3288 + $0x1a0] sm:$0xff] %v3341
                  %v3343 = vld [vmem:[%s3287 + $0xd8] sm:$0xff]
                  %3344 = vst [vmem:[%s3288 + $0x1a8] sm:$0xff] %v3343
                  %v3345 = vld [vmem:[%s3287 + $0xe0] sm:$0xff]
                  %3346 = vst [vmem:[%s3288 + $0x1c0] sm:$0xff] %v3345
                  %v3347 = vld [vmem:[%s3287 + $0xe8] sm:$0xff]
                  %3348 = vst [vmem:[%s3288 + $0x1c8] sm:$0xff] %v3347
                  %v3349 = vld [vmem:[%s3287 + $0xf0] sm:$0xff]
                  %3350 = vst [vmem:[%s3288 + $0x1e0] sm:$0xff] %v3349
                  %v3351 = vld [vmem:[%s3287 + $0xf8] sm:$0xff]
                  %3352 = vst [vmem:[%s3288 + $0x1e8] sm:$0xff] %v3351
                $region60: #{deconv_block_forward.1} parent=54 // loop_footer
                  %s3286 = sadd.s32 1, %s3282
                $region61: #{deconv_block_forward.1} parent=54 // loop_footer_branch
                  %3281 = sbr.rel target = $region57
                $region62: #{deconv_block_forward.1} parent=54 // loop_exit
                  _
              $region55: #{deconv_block_forward.1} parent=39 // pred_fallthru
                _
              // Predicated region
              $region63: #{deconv_block_forward.1} parent=39 // pred_check
                _
              $region64: #{deconv_block_forward.1} parent=39 // pred_check_branch
                %3354 = sbr.rel target = $region66
              $region65: #{deconv_block_forward.1} parent=39 // pred_region
                _
              $region66: #{deconv_block_forward.1} parent=39 // pred_fallthru
                _
            $region40: #{deconv_block_forward.1} parent=35 // pred_fallthru
              _
            // Predicated region
            $region41: #{deconv_block_forward.1} parent=35 // pred_check
              _
            $region42: #{deconv_block_forward.1} parent=35 // pred_check_branch
              %3205 = sbr.rel target = $region44
            $region43: #{deconv_block_forward.1} parent=35 // pred_region
              loop: start=0, step=1, limit=1
              $region45: #{deconv_block_forward.1} parent=43 // loop_pre_header
                _
              $region46: #{deconv_block_forward.1} parent=43 // loop_header
                %s3208 = sphi 0, %s3212
                %p3209 = scmp.ge.s32.totalorder %s3208, 1
                %s3213 = sphi %s3183, %s3183
                %s3214 = sphi %s3199, %s3199
              $region47: #{deconv_block_forward.1} parent=43 // loop_header_branch
                %3211 = sbr.rel (%p3209) target = $region51
              $region48: #{deconv_block_forward.1} parent=43 // loop_body
                %v3215 = vld [vmem:[%s3213] sm:$0xff]
                %3216 = vst [vmem:[%s3214] sm:$0xff] %v3215
                %v3217 = vld [vmem:[%s3213 + $0x8] sm:$0xff]
                %3218 = vst [vmem:[%s3214 + $0x8] sm:$0xff] %v3217
                %v3219 = vld [vmem:[%s3213 + $0x10] sm:$0xff]
                %3220 = vst [vmem:[%s3214 + $0x20] sm:$0xff] %v3219
                %v3221 = vld [vmem:[%s3213 + $0x18] sm:$0xff]
                %3222 = vst [vmem:[%s3214 + $0x28] sm:$0xff] %v3221
                %v3223 = vld [vmem:[%s3213 + $0x20] sm:$0xff]
                %3224 = vst [vmem:[%s3214 + $0x40] sm:$0xff] %v3223
                %v3225 = vld [vmem:[%s3213 + $0x28] sm:$0xff]
                %3226 = vst [vmem:[%s3214 + $0x48] sm:$0xff] %v3225
                %v3227 = vld [vmem:[%s3213 + $0x30] sm:$0xff]
                %3228 = vst [vmem:[%s3214 + $0x60] sm:$0xff] %v3227
                %v3229 = vld [vmem:[%s3213 + $0x38] sm:$0xff]
                %3230 = vst [vmem:[%s3214 + $0x68] sm:$0xff] %v3229
                %v3231 = vld [vmem:[%s3213 + $0x40] sm:$0xff]
                %3232 = vst [vmem:[%s3214 + $0x80] sm:$0xff] %v3231
                %v3233 = vld [vmem:[%s3213 + $0x48] sm:$0xff]
                %3234 = vst [vmem:[%s3214 + $0x88] sm:$0xff] %v3233
                %v3235 = vld [vmem:[%s3213 + $0x50] sm:$0xff]
                %3236 = vst [vmem:[%s3214 + $0xa0] sm:$0xff] %v3235
                %v3237 = vld [vmem:[%s3213 + $0x58] sm:$0xff]
                %3238 = vst [vmem:[%s3214 + $0xa8] sm:$0xff] %v3237
                %v3239 = vld [vmem:[%s3213 + $0x60] sm:$0xff]
                %3240 = vst [vmem:[%s3214 + $0xc0] sm:$0xff] %v3239
                %v3241 = vld [vmem:[%s3213 + $0x68] sm:$0xff]
                %3242 = vst [vmem:[%s3214 + $0xc8] sm:$0xff] %v3241
                %v3243 = vld [vmem:[%s3213 + $0x70] sm:$0xff]
                %3244 = vst [vmem:[%s3214 + $0xe0] sm:$0xff] %v3243
                %v3245 = vld [vmem:[%s3213 + $0x78] sm:$0xff]
                %3246 = vst [vmem:[%s3214 + $0xe8] sm:$0xff] %v3245
                %v3247 = vld [vmem:[%s3213 + $0x80] sm:$0xff]
                %3248 = vst [vmem:[%s3214 + $0x100] sm:$0xff] %v3247
                %v3249 = vld [vmem:[%s3213 + $0x88] sm:$0xff]
                %3250 = vst [vmem:[%s3214 + $0x108] sm:$0xff] %v3249
                %v3251 = vld [vmem:[%s3213 + $0x90] sm:$0xff]
                %3252 = vst [vmem:[%s3214 + $0x120] sm:$0xff] %v3251
                %v3253 = vld [vmem:[%s3213 + $0x98] sm:$0xff]
                %3254 = vst [vmem:[%s3214 + $0x128] sm:$0xff] %v3253
                %v3255 = vld [vmem:[%s3213 + $0xa0] sm:$0xff]
                %3256 = vst [vmem:[%s3214 + $0x140] sm:$0xff] %v3255
                %v3257 = vld [vmem:[%s3213 + $0xa8] sm:$0xff]
                %3258 = vst [vmem:[%s3214 + $0x148] sm:$0xff] %v3257
                %v3259 = vld [vmem:[%s3213 + $0xb0] sm:$0xff]
                %3260 = vst [vmem:[%s3214 + $0x160] sm:$0xff] %v3259
                %v3261 = vld [vmem:[%s3213 + $0xb8] sm:$0xff]
                %3262 = vst [vmem:[%s3214 + $0x168] sm:$0xff] %v3261
                %v3263 = vld [vmem:[%s3213 + $0xc0] sm:$0xff]
                %3264 = vst [vmem:[%s3214 + $0x180] sm:$0xff] %v3263
                %v3265 = vld [vmem:[%s3213 + $0xc8] sm:$0xff]
                %3266 = vst [vmem:[%s3214 + $0x188] sm:$0xff] %v3265
                %v3267 = vld [vmem:[%s3213 + $0xd0] sm:$0xff]
                %3268 = vst [vmem:[%s3214 + $0x1a0] sm:$0xff] %v3267
                %v3269 = vld [vmem:[%s3213 + $0xd8] sm:$0xff]
                %3270 = vst [vmem:[%s3214 + $0x1a8] sm:$0xff] %v3269
                %v3271 = vld [vmem:[%s3213 + $0xe0] sm:$0xff]
                %3272 = vst [vmem:[%s3214 + $0x1c0] sm:$0xff] %v3271
                %v3273 = vld [vmem:[%s3213 + $0xe8] sm:$0xff]
                %3274 = vst [vmem:[%s3214 + $0x1c8] sm:$0xff] %v3273
                %v3275 = vld [vmem:[%s3213 + $0xf0] sm:$0xff]
                %3276 = vst [vmem:[%s3214 + $0x1e0] sm:$0xff] %v3275
                %v3277 = vld [vmem:[%s3213 + $0xf8] sm:$0xff]
                %3278 = vst [vmem:[%s3214 + $0x1e8] sm:$0xff] %v3277
              $region49: #{deconv_block_forward.1} parent=43 // loop_footer
                %s3212 = sadd.s32 1, %s3208
              $region50: #{deconv_block_forward.1} parent=43 // loop_footer_branch
                %3207 = sbr.rel target = $region46
              $region51: #{deconv_block_forward.1} parent=43 // loop_exit
                _
            $region44: #{deconv_block_forward.1} parent=35 // pred_fallthru
              _
          $region36: #{deconv_block_forward.1} parent=31 // pred_fallthru
            _
          %3355 = vnop
        $region32: #{deconv_block_forward.1} parent=27 // pred_fallthru
          _
        // Predicated region
        $region67: #{deconv_block_forward.1} parent=27 // pred_check
          %p3356 = pneg %p122
        $region68: #{deconv_block_forward.1} parent=27 // pred_check_branch
          %3358 = sbr.rel (%p3356) target = $region70
        $region69: #{deconv_block_forward.1} parent=27 // pred_region
          _
        $region70: #{deconv_block_forward.1} parent=27 // pred_fallthru
          _
      $region28: #{deconv_block_forward.1} parent=5 // pred_fallthru
        _
      %p3359 = scmp.le.s32.totalorder 2, %s10
      // Predicated region
      $region71: #{deconv_block_forward.1} parent=5 // pred_check
        %p3360 = pneg %p3359
      $region72: #{deconv_block_forward.1} parent=5 // pred_check_branch
        %3362 = sbr.rel (%p3360) target = $region74
      $region73: #{deconv_block_forward.1} parent=5 // pred_region
        %s3363 = ssub.s32 %s10, 2
        // Predicated region
        $region75: #{deconv_block_forward.1} parent=73 // pred_check
          %p3364 = pneg %p100
        $region76: #{deconv_block_forward.1} parent=73 // pred_check_branch
          %3366 = sbr.rel (%p3364) target = $region78
        $region77: #{deconv_block_forward.1} parent=73 // pred_region
          %s3367 = sand.u32 %s85, 1
          %s3368 = sand.u32 %s85, 1
          %s3369 = smul.addr %s3368, 256
          %s3370 = scalar_lea.vmem [#allocation2], %s3369
        $region78: #{deconv_block_forward.1} parent=73 // pred_fallthru
          _
        // Predicated region
        $region79: #{deconv_block_forward.1} parent=73 // pred_check
          %p3371 = pneg %p128
        $region80: #{deconv_block_forward.1} parent=73 // pred_check_branch
          %3373 = sbr.rel (%p3371) target = $region82
        $region81: #{deconv_block_forward.1} parent=73 // pred_region
          %p3374 = scmp.lt.s32.totalorder %s21, 1
          %s3375 = scalar_select %p3374, %s21, 1
          %p3376 = scmp.lt.s32.totalorder %s22, 1
          %s3377 = scalar_select %p3376, %s22, 1
          %s3378 = smul.addr %s3375, 2
          %s3379 = sadd.s32 %s3377, %s3378
          %s3380 = smul.addr %s3379, 2
          %s3381 = scalar_lea.vmem %s3, %s3380
        $region82: #{deconv_block_forward.1} parent=73 // pred_fallthru
          _
      $region74: #{deconv_block_forward.1} parent=5 // pred_fallthru
        _
    $region6: #{deconv_block_forward.1} parent=1 // loop_footer
      %s14 = sadd.s32 1, %s10
    $region7: #{deconv_block_forward.1} parent=1 // loop_footer_branch
      %9 = sbr.rel target = $region3
    $region8: #{deconv_block_forward.1} parent=1 // loop_exit
      _

</llo_original>
